<compile_context>
chip_gen: v5e
topology: v5e:2x2
jax: 0.10.0
libtpu: 0.0.40
codegen_flags: <defaults>
</compile_context>

<pallas_src>
import functools

import numpy as np
import jax
import jax.numpy as jnp
from jax.experimental import pallas as pl
from jax.experimental.pallas import tpu as pltpu

EPS = 1e-5      # torch.nn.BatchNorm2d default eps
LANE = 128      # lane width: every flattened (W*C) axis is zero-padded to a multiple of this
SUB = 8         # sublane multiple for (N*H) row axes


def _round_up(v, m):
    return ((v + m - 1) // m) * m


# ----------------------------------------------------------------------------
# One-time parameter preparation (numpy, off the hot path): packed operands + static metas.
# ----------------------------------------------------------------------------
def build_plan(params, N, H, W):
    layer_defs = [
        dict(w="w1", g=None, b=None, bn=False, relu=True, stride=2),
        dict(w="w2", g="g2", b="b2", bn=True, relu=True, stride=2),
        dict(w="w3", g="g3", b="b3", bn=True, relu=True, stride=2),
        dict(w="w4", g="g4", b="b4", bn=True, relu=True, stride=2),
        dict(w="w5", g=None, b=None, bn=False, relu=False, stride=1),
    ]
    pad = 1
    L = len(layer_defs)

    # ---- geometry pass ------------------------------------------------------
    geom = []
    Hin, Win = H, W
    Cin = int(np.asarray(params["w1"]).shape[1])
    for ld in layer_defs:
        wt = np.asarray(params[ld["w"]], np.float32)          # [Cout, Cin, KH, KW]
        Cout, _, KH, KW = wt.shape
        s = ld["stride"]
        OH = (Hin + 2 * pad - KH) // s + 1
        OW = (Win + 2 * pad - KW) // s + 1
        geom.append(dict(
            wt=wt, ld=ld, s=s, KH=KH, KW=KW,
            Hin=Hin, Win=Win, Cin=Cin, OH=OH, OW=OW, Cout=Cout,
            rows_in=_round_up(N * Hin, SUB), rows_out=_round_up(N * OH, SUB),
            lane_in=_round_up(Win * Cin, LANE), lane_out=_round_up(OW * Cout, LANE)))
        Hin, Win, Cin = OH, OW, Cout

    max_kh = max(g["KH"] for g in geom)
    max_sel_rows = _round_up(max(g["KH"] * g["rows_out"] for g in geom), SUB)
    max_rows_in = max(g["rows_in"] for g in geom)
    max_lane_in = max(g["lane_in"] for g in geom)
    max_lane_out = max(g["lane_out"] for g in geom)
    n_bn = sum(1 for g in geom if g["ld"]["bn"])

    # ---- packed constant operands (3 arrays instead of 22) -------------------
    s_stack = np.zeros((L, max_sel_rows, max_rows_in), np.float32)        # 0/1 selection
    w_stack = np.zeros((L * max_kh, max_lane_in, max_lane_out), np.float32)
    bn_stack = np.zeros((_round_up(max(2 * n_bn, 1), SUB), max_lane_out), np.float32)
    p_list = []   # fallback BN fold matrices (unused when the roll path applies)

    metas = []
    bn_idx = 0
    for li, g in enumerate(geom):
        KH, KW, s = g["KH"], g["KW"], g["s"]
        OH, OW, Cout = g["OH"], g["OW"], g["Cout"]
        Cin_, Hin_, Win_ = g["Cin"], g["Hin"], g["Win"]
        ro, ri = g["rows_out"], g["rows_in"]
        lin, lout = g["lane_in"], g["lane_out"]
        wt = g["wt"]

        active_kh = []
        for kh in range(KH):
            any_valid = False
            # H-direction selection (stride + zero padding), block-diagonal over batch.
            for n in range(N):
                for oh in range(OH):
                    h = s * oh + kh - pad
                    if 0 <= h < Hin_:
                        s_stack[li, kh * ro + n * OH + oh, n * Hin_ + h] = 1.0
                        any_valid = True
            # Banded weight for this kh: W-direction stride/padding + channel contraction.
            for ow in range(OW):
                for kw in range(KW):
                    w = s * ow + kw - pad
                    if 0 <= w < Win_:
                        w_stack[li * max_kh + kh,
                                w * Cin_:(w + 1) * Cin_,
                                ow * Cout:(ow + 1) * Cout] = wt[:, :, kh, kw].T
            if any_valid:
                active_kh.append(kh)

        meta = dict(idx=li, wk_base=li * max_kh, kh_list=tuple(active_kh),
                    rows_out=ro, rows_in=ri, lane_in=lin, lane_out=lout,
                    sel_rows=KH * ro, cout=Cout, ow=OW,
                    bn=g["ld"]["bn"], relu=g["ld"]["relu"],
                    count=float(N * OH * OW), last=(li == L - 1))

        if g["ld"]["bn"]:
            gam = np.asarray(params[g["ld"]["g"]], np.float32)
            bet = np.asarray(params[g["ld"]["b"]], np.float32)
            row = 2 * bn_idx
            for ow in range(OW):
                bn_stack[row, ow * Cout:(ow + 1) * Cout] = gam
                bn_stack[row + 1, ow * Cout:(ow + 1) * Cout] = bet
            meta["bn_row"] = row
            # Roll-based fold needs a power-of-2 OW and no pad lanes (circular rotation).
            use_roll = (OW & (OW - 1)) == 0 and OW * Cout == lout
            meta["use_roll"] = use_roll
            if not use_roll:
                P = np.zeros((max_lane_out, max_lane_out), np.float32)
                for c in range(Cout):
                    for ow1 in range(OW):
                        for ow2 in range(OW):
                            P[ow1 * Cout + c, ow2 * Cout + c] = 1.0
                meta["p_idx"] = len(p_list)
                p_list.append(P)
            bn_idx += 1
        metas.append(meta)

    operands = [jnp.asarray(s_stack, jnp.bfloat16),    # 0/1 -> exact in bf16
                jnp.asarray(w_stack, jnp.bfloat16),
                jnp.asarray(bn_stack, jnp.float32)]
    has_pfold = bool(p_list)
    if has_pfold:
        operands.append(jnp.asarray(np.stack(p_list), jnp.float32))

    last = geom[-1]
    out_info = dict(rows_pad=last["rows_out"], lane_pad=last["lane_out"],
                    rows_real=N * last["OH"], OH=last["OH"], OW=last["OW"],
                    Cout=last["Cout"])
    return operands, metas, out_info, geom[0]["rows_in"], geom[0]["lane_in"], has_pfold


# ----------------------------------------------------------------------------
# The single fused Pallas kernel: conv -> (BN) -> (ReLU) for all 5 layers in VMEM.
# ----------------------------------------------------------------------------
def _fused_forward_kernel(x_ref, s_ref, w_ref, bn_ref, *rest, metas, has_pfold):
    p_ref = rest[0] if has_pfold else None
    out_ref = rest[-1]

    X = x_ref[...]                      # bf16 [rows_in0, lane_in0]; stays on-chip throughout
    bn_all = bn_ref[...]                # f32 gamma/beta rows (tiled over OW groups)

    for m in metas:
        ro, ri = m["rows_out"], m["rows_in"]
        lin, lout = m["lane_in"], m["lane_out"]

        # ---- H-direction selection: ONE MXU push per layer (M = KH*rows_out) ----
        S = s_ref[m["idx"]]
        if S.shape != (m["sel_rows"], ri):
            S = S[:m["sel_rows"], :ri]
        R = jnp.dot(S, X, preferred_element_type=jnp.float32)   # exact row copies of X

        # ---- W-direction + channel contraction: per-kh accumulate (K = lane_in) ----
        Y = None
        for k in m["kh_list"]:                                  # dead kh blocks skipped
            part = R[k * ro:(k + 1) * ro, :].astype(jnp.bfloat16)   # exact (copies of bf16 X)
            Wk = w_ref[m["wk_base"] + k]
            if Wk.shape != (lin, lout):
                Wk = Wk[:lin, :lout]
            d = jnp.dot(part, Wk, preferred_element_type=jnp.float32)
            Y = d if Y is None else Y + d

        if m["bn"]:
            # Padded rows of Y are exactly zero (selection never writes them), so the raw
            # sums only see real samples; divide by the real count.
            inv_cnt = 1.0 / m["count"]
            s1 = jnp.sum(Y, axis=0, keepdims=True)              # [1, lane_out]
            s2 = jnp.sum(Y * Y, axis=0, keepdims=True)
            if m["use_roll"]:
                # Butterfly all-reduce over the OW width-groups along the lane axis (XLU).
                shift = m["cout"]
                while shift < lout:
                    s1 = s1 + pltpu.roll(s1, shift, axis=1)
                    s2 = s2 + pltpu.roll(s2, shift, axis=1)
                    shift *= 2
            else:
                P = p_ref[m["p_idx"]]
                if P.shape != (lout, lout):
                    P = P[:lout, :lout]
                s1 = jnp.dot(s1, P, preferred_element_type=jnp.float32)
                s2 = jnp.dot(s2, P, preferred_element_type=jnp.float32)
            mean = s1 * inv_cnt
            var = s2 * inv_cnt - mean * mean     # biased var, train-mode BN (f32 stats, O(1) values)
            gam = bn_all[m["bn_row"]:m["bn_row"] + 1, :lout]
            bet = bn_all[m["bn_row"] + 1:m["bn_row"] + 2, :lout]
            Y = (Y - mean) * jax.lax.rsqrt(var + EPS) * gam + bet

        if m["relu"]:
            Y = jnp.maximum(Y, 0.0)

        if m["last"]:
            out_ref[...] = Y                       # f32 lane-dense output tile
        else:
            X = Y.astype(jnp.bfloat16)             # feed next layer at native MXU dtype


# ----------------------------------------------------------------------------
# Wrapper: builds the pallas_call once and returns a jitted forward (NCHW -> NCHW).
# ----------------------------------------------------------------------------
def make_forward(params, N, C, H, W):
    operands, metas, out_info, in_rows, in_lane, has_pfold = build_plan(params, N, H, W)
    kernel = functools.partial(_fused_forward_kernel, metas=metas, has_pfold=has_pfold)

    def _full_spec(shape):
        nd = len(shape)
        return pl.BlockSpec(tuple(shape), lambda i, _nd=nd: (0,) * _nd)

    in_shapes = [(in_rows, in_lane)] + [tuple(o.shape) for o in operands]
    out_shape2d = (out_info["rows_pad"], out_info["lane_pad"])

    fused = pl.pallas_call(
        kernel,
        out_shape=jax.ShapeDtypeStruct(out_shape2d, jnp.float32),
        grid=(1,),  # entire (tiny) network fits in VMEM; single pipeline step
        in_specs=[_full_spec(s) for s in in_shapes],
        out_specs=_full_spec(out_shape2d),
        compiler_params=pltpu.CompilerParams(dimension_semantics=("arbitrary",)),
    )

    OH, OW, Cout = out_info["OH"], out_info["OW"], out_info["Cout"]
    rows_real = out_info["rows_real"]

    @jax.jit
    def forward(x_nchw):
        x = jnp.transpose(x_nchw, (0, 2, 3, 1))                 # NCHW -> NHWC
        x2d = x.reshape(N * H, W * C)
        x2d = jnp.pad(x2d, ((0, in_rows - N * H), (0, in_lane - W * C)))
        y2d = fused(x2d.astype(jnp.bfloat16), *operands)
        y = y2d[:rows_real, : OW * Cout].reshape(N, OH, OW, Cout)
        return jnp.transpose(y, (0, 3, 1, 2))                   # NHWC -> NCHW

    return forward


# ----------------------------------------------------------------------------
# Parameters (deterministic, synthetic; shapes follow Discriminator_Cycle.__init__,
# Conv2d bias=False everywhere as in the reference module).
# ----------------------------------------------------------------------------
def init_params(key, conv_dim=8):
    cd = conv_dim
    ks = jax.random.split(key, 5)

    def w(k, cout, cin):
        return jax.random.normal(k, (cout, cin, 4, 4), jnp.float32) * 0.05

    return {
        "w1": w(ks[0], cd, 3),
        "w2": w(ks[1], cd * 2, cd),
        "g2": jnp.ones((cd * 2,), jnp.float32),
        "b2": jnp.zeros((cd * 2,), jnp.float32),
        "w3": w(ks[2], cd * 4, cd * 2),
        "g3": jnp.ones((cd * 4,), jnp.float32),
        "b3": jnp.zeros((cd * 4,), jnp.float32),
        "w4": w(ks[3], cd * 8, cd * 4),
        "g4": jnp.ones((cd * 8,), jnp.float32),
        "b4": jnp.zeros((cd * 8,), jnp.float32),
        "w5": w(ks[4], 1, cd * 8),
    }


# ----------------------------------------------------------------------------
# Pure-JAX reference (same semantics as the PyTorch module in .train() mode).
# ----------------------------------------------------------------------------
def reference_forward(x_nchw, params):
    x = jnp.transpose(x_nchw, (0, 2, 3, 1))

    def conv2d(x, w_oihw, stride):
        return jax.lax.conv_general_dilated(
            x, jnp.transpose(w_oihw, (2, 3, 1, 0)),
            window_strides=(stride, stride), padding=((1, 1), (1, 1)),
            dimension_numbers=("NHWC", "HWIO", "NHWC"),
            precision=jax.lax.Precision.HIGHEST)

    def bn(x, g, b):
        m = jnp.mean(x, axis=(0, 1, 2), keepdims=True)
        v = jnp.mean((x - m) ** 2, axis=(0, 1, 2), keepdims=True)
        return (x - m) * jax.lax.rsqrt(v + EPS) * g + b

    x = jax.nn.relu(conv2d(x, params["w1"], 2))
    x = jax.nn.relu(bn(conv2d(x, params["w2"], 2), params["g2"], params["b2"]))
    x = jax.nn.relu(bn(conv2d(x, params["w3"], 2), params["g3"], params["b3"]))
    x = jax.nn.relu(bn(conv2d(x, params["w4"], 2), params["g4"], params["b4"]))
    x = conv2d(x, params["w5"], 1)
    return jnp.transpose(x, (0, 3, 1, 2))


if __name__ == "__main__":
    key = jax.random.PRNGKey(0)
    k_x, k_p = jax.random.split(key)

    N, C, H, W = 2, 3, 32, 32
    conv_dim = 8

    x = jax.random.normal(k_x, (N, C, H, W), jnp.float32)
    params = init_params(k_p, conv_dim=conv_dim)

    forward = make_forward(params, N, C, H, W)
    out = jax.block_until_ready(forward(x))

    # spatial chain: 32 -> 16 -> 8 -> 4 -> 2 -> 1 ; final channels = 1
    assert out.shape == (N, 1, 1, 1), out.shape
    assert bool(jnp.all(jnp.isfinite(out)))

    ref = jax.block_until_ready(reference_forward(x, params))
    scale = 1.0 + float(jnp.max(jnp.abs(ref)))
    max_err = float(jnp.max(jnp.abs(out - ref)))
    assert max_err < 0.05 * scale, f"mismatch vs reference: max|diff|={max_err}"

    print("KERNEL_OK")
</pallas_src>

<mosaic_0001>
module attributes {stable_mosaic.version = 11 : i64} {
  func.func @_fused_forward_kernel(%arg0: i32, %arg1: memref<64x128xbf16, #tpu.memory_space<vmem>>, %arg2: memref<5x128x64xbf16, #tpu.memory_space<vmem>>, %arg3: memref<20x128x128xbf16, #tpu.memory_space<vmem>>, %arg4: memref<8x128xf32, #tpu.memory_space<vmem>>, %arg5: memref<8x128xf32, #tpu.memory_space<vmem>>) attributes {dimension_semantics = [#tpu.dimension_semantics<arbitrary>], iteration_bounds = array<i64: 1>, scalar_prefetch = 0 : i64, scratch_operands = 0 : i64, tpu.core_type = #tpu.core_type<tc>, window_params = [{pipeline_mode = #tpu.pipeline_mode<synchronous>, transform_indices = @transform_0, window_bounds = array<i64: 64, 128>}, {pipeline_mode = #tpu.pipeline_mode<synchronous>, transform_indices = @transform_1, window_bounds = array<i64: 5, 128, 64>}, {pipeline_mode = #tpu.pipeline_mode<synchronous>, transform_indices = @transform_2, window_bounds = array<i64: 20, 128, 128>}, {pipeline_mode = #tpu.pipeline_mode<synchronous>, transform_indices = @transform_3, window_bounds = array<i64: 8, 128>}, {pipeline_mode = #tpu.pipeline_mode<synchronous>, transform_indices = @transform_4, window_bounds = array<i64: 8, 128>}]} {
    %c0 = arith.constant 0 : index
    %c0_0 = arith.constant 0 : index
    %0 = vector.load %arg1[%c0, %c0_0] : memref<64x128xbf16, #tpu.memory_space<vmem>>, vector<64x128xbf16>
    %c0_1 = arith.constant 0 : index
    %c0_2 = arith.constant 0 : index
    %1 = vector.load %arg4[%c0_1, %c0_2] : memref<8x128xf32, #tpu.memory_space<vmem>>, vector<8x128xf32>
    %c0_3 = arith.constant 0 : index
    %c0_4 = arith.constant 0 : index
    %c0_5 = arith.constant 0 : index
    %2 = vector.load %arg2[%c0_3, %c0_4, %c0_5] : memref<5x128x64xbf16, #tpu.memory_space<vmem>>, vector<1x128x64xbf16>
    %3 = vector.shape_cast %2 : vector<1x128x64xbf16> to vector<128x64xbf16>
    %cst = arith.constant dense<0.000000e+00> : vector<128x128xf32>
    %4 = tpu.matmul %3, %0, %cst {dimension_numbers = #tpu.dot_dimension_numbers<[1], [0], [0], [1], [0, 0, 1, 1], [], []>} : vector<128x64xbf16>, vector<64x128xbf16>, vector<128x128xf32> -> vector<128x128xf32>
    %5 = vector.extract_strided_slice %4 {offsets = [0, 0], sizes = [32, 128], strides = [1, 1]} : vector<128x128xf32> to vector<32x128xf32>
    %6 = arith.truncf %5 : vector<32x128xf32> to vector<32x128xbf16>
    %c0_6 = arith.constant 0 : index
    %c0_7 = arith.constant 0 : index
    %c0_8 = arith.constant 0 : index
    %7 = vector.load %arg3[%c0_6, %c0_7, %c0_8] : memref<20x128x128xbf16, #tpu.memory_space<vmem>>, vector<1x128x128xbf16>
    %8 = vector.shape_cast %7 : vector<1x128x128xbf16> to vector<128x128xbf16>
    %cst_9 = arith.constant dense<0.000000e+00> : vector<32x128xf32>
    %9 = tpu.matmul %6, %8, %cst_9 {dimension_numbers = #tpu.dot_dimension_numbers<[1], [0], [0], [1], [0, 0, 1, 1], [], []>} : vector<32x128xbf16>, vector<128x128xbf16>, vector<32x128xf32> -> vector<32x128xf32>
    %10 = vector.extract_strided_slice %4 {offsets = [32, 0], sizes = [32, 128], strides = [1, 1]} : vector<128x128xf32> to vector<32x128xf32>
    %11 = arith.truncf %10 : vector<32x128xf32> to vector<32x128xbf16>
    %c1 = arith.constant 1 : index
    %c0_10 = arith.constant 0 : index
    %c0_11 = arith.constant 0 : index
    %12 = vector.load %arg3[%c1, %c0_10, %c0_11] : memref<20x128x128xbf16, #tpu.memory_space<vmem>>, vector<1x128x128xbf16>
    %13 = vector.shape_cast %12 : vector<1x128x128xbf16> to vector<128x128xbf16>
    %cst_12 = arith.constant dense<0.000000e+00> : vector<32x128xf32>
    %14 = tpu.matmul %11, %13, %cst_12 {dimension_numbers = #tpu.dot_dimension_numbers<[1], [0], [0], [1], [0, 0, 1, 1], [], []>} : vector<32x128xbf16>, vector<128x128xbf16>, vector<32x128xf32> -> vector<32x128xf32>
    %15 = arith.addf %9, %14 : vector<32x128xf32>
    %16 = vector.extract_strided_slice %4 {offsets = [64, 0], sizes = [32, 128], strides = [1, 1]} : vector<128x128xf32> to vector<32x128xf32>
    %17 = arith.truncf %16 : vector<32x128xf32> to vector<32x128xbf16>
    %c2 = arith.constant 2 : index
    %c0_13 = arith.constant 0 : index
    %c0_14 = arith.constant 0 : index
    %18 = vector.load %arg3[%c2, %c0_13, %c0_14] : memref<20x128x128xbf16, #tpu.memory_space<vmem>>, vector<1x128x128xbf16>
    %19 = vector.shape_cast %18 : vector<1x128x128xbf16> to vector<128x128xbf16>
    %cst_15 = arith.constant dense<0.000000e+00> : vector<32x128xf32>
    %20 = tpu.matmul %17, %19, %cst_15 {dimension_numbers = #tpu.dot_dimension_numbers<[1], [0], [0], [1], [0, 0, 1, 1], [], []>} : vector<32x128xbf16>, vector<128x128xbf16>, vector<32x128xf32> -> vector<32x128xf32>
    %21 = arith.addf %15, %20 : vector<32x128xf32>
    %22 = vector.extract_strided_slice %4 {offsets = [96, 0], sizes = [32, 128], strides = [1, 1]} : vector<128x128xf32> to vector<32x128xf32>
    %23 = arith.truncf %22 : vector<32x128xf32> to vector<32x128xbf16>
    %c3 = arith.constant 3 : index
    %c0_16 = arith.constant 0 : index
    %c0_17 = arith.constant 0 : index
    %24 = vector.load %arg3[%c3, %c0_16, %c0_17] : memref<20x128x128xbf16, #tpu.memory_space<vmem>>, vector<1x128x128xbf16>
    %25 = vector.shape_cast %24 : vector<1x128x128xbf16> to vector<128x128xbf16>
    %cst_18 = arith.constant dense<0.000000e+00> : vector<32x128xf32>
    %26 = tpu.matmul %23, %25, %cst_18 {dimension_numbers = #tpu.dot_dimension_numbers<[1], [0], [0], [1], [0, 0, 1, 1], [], []>} : vector<32x128xbf16>, vector<128x128xbf16>, vector<32x128xf32> -> vector<32x128xf32>
    %27 = arith.addf %21, %26 : vector<32x128xf32>
    %cst_19 = arith.constant 0.000000e+00 : f32
    %28 = vector.broadcast %cst_19 : f32 to vector<32x128xf32>
    %29 = arith.maximumf %27, %28 : vector<32x128xf32>
    %30 = arith.truncf %29 : vector<32x128xf32> to vector<32x128xbf16>
    %c1_20 = arith.constant 1 : index
    %c0_21 = arith.constant 0 : index
    %c0_22 = arith.constant 0 : index
    %31 = vector.load %arg2[%c1_20, %c0_21, %c0_22] : memref<5x128x64xbf16, #tpu.memory_space<vmem>>, vector<1x128x64xbf16>
    %32 = vector.shape_cast %31 : vector<1x128x64xbf16> to vector<128x64xbf16>
    %33 = vector.extract_strided_slice %32 {offsets = [0, 0], sizes = [64, 32], strides = [1, 1]} : vector<128x64xbf16> to vector<64x32xbf16>
    %cst_23 = arith.constant dense<0.000000e+00> : vector<64x128xf32>
    %34 = tpu.matmul %33, %30, %cst_23 {dimension_numbers = #tpu.dot_dimension_numbers<[1], [0], [0], [1], [0, 0, 1, 1], [], []>} : vector<64x32xbf16>, vector<32x128xbf16>, vector<64x128xf32> -> vector<64x128xf32>
    %35 = vector.extract_strided_slice %34 {offsets = [0, 0], sizes = [16, 128], strides = [1, 1]} : vector<64x128xf32> to vector<16x128xf32>
    %36 = arith.truncf %35 : vector<16x128xf32> to vector<16x128xbf16>
    %c4 = arith.constant 4 : index
    %c0_24 = arith.constant 0 : index
    %c0_25 = arith.constant 0 : index
    %37 = vector.load %arg3[%c4, %c0_24, %c0_25] : memref<20x128x128xbf16, #tpu.memory_space<vmem>>, vector<1x128x128xbf16>
    %38 = vector.shape_cast %37 : vector<1x128x128xbf16> to vector<128x128xbf16>
    %cst_26 = arith.constant dense<0.000000e+00> : vector<16x128xf32>
    %39 = tpu.matmul %36, %38, %cst_26 {dimension_numbers = #tpu.dot_dimension_numbers<[1], [0], [0], [1], [0, 0, 1, 1], [], []>} : vector<16x128xbf16>, vector<128x128xbf16>, vector<16x128xf32> -> vector<16x128xf32>
    %40 = vector.extract_strided_slice %34 {offsets = [16, 0], sizes = [16, 128], strides = [1, 1]} : vector<64x128xf32> to vector<16x128xf32>
    %41 = arith.truncf %40 : vector<16x128xf32> to vector<16x128xbf16>
    %c5 = arith.constant 5 : index
    %c0_27 = arith.constant 0 : index
    %c0_28 = arith.constant 0 : index
    %42 = vector.load %arg3[%c5, %c0_27, %c0_28] : memref<20x128x128xbf16, #tpu.memory_space<vmem>>, vector<1x128x128xbf16>
    %43 = vector.shape_cast %42 : vector<1x128x128xbf16> to vector<128x128xbf16>
    %cst_29 = arith.constant dense<0.000000e+00> : vector<16x128xf32>
    %44 = tpu.matmul %41, %43, %cst_29 {dimension_numbers = #tpu.dot_dimension_numbers<[1], [0], [0], [1], [0, 0, 1, 1], [], []>} : vector<16x128xbf16>, vector<128x128xbf16>, vector<16x128xf32> -> vector<16x128xf32>
    %45 = arith.addf %39, %44 : vector<16x128xf32>
    %46 = vector.extract_strided_slice %34 {offsets = [32, 0], sizes = [16, 128], strides = [1, 1]} : vector<64x128xf32> to vector<16x128xf32>
    %47 = arith.truncf %46 : vector<16x128xf32> to vector<16x128xbf16>
    %c6 = arith.constant 6 : index
    %c0_30 = arith.constant 0 : index
    %c0_31 = arith.constant 0 : index
    %48 = vector.load %arg3[%c6, %c0_30, %c0_31] : memref<20x128x128xbf16, #tpu.memory_space<vmem>>, vector<1x128x128xbf16>
    %49 = vector.shape_cast %48 : vector<1x128x128xbf16> to vector<128x128xbf16>
    %cst_32 = arith.constant dense<0.000000e+00> : vector<16x128xf32>
    %50 = tpu.matmul %47, %49, %cst_32 {dimension_numbers = #tpu.dot_dimension_numbers<[1], [0], [0], [1], [0, 0, 1, 1], [], []>} : vector<16x128xbf16>, vector<128x128xbf16>, vector<16x128xf32> -> vector<16x128xf32>
    %51 = arith.addf %45, %50 : vector<16x128xf32>
    %52 = vector.extract_strided_slice %34 {offsets = [48, 0], sizes = [16, 128], strides = [1, 1]} : vector<64x128xf32> to vector<16x128xf32>
    %53 = arith.truncf %52 : vector<16x128xf32> to vector<16x128xbf16>
    %c7 = arith.constant 7 : index
    %c0_33 = arith.constant 0 : index
    %c0_34 = arith.constant 0 : index
    %54 = vector.load %arg3[%c7, %c0_33, %c0_34] : memref<20x128x128xbf16, #tpu.memory_space<vmem>>, vector<1x128x128xbf16>
    %55 = vector.shape_cast %54 : vector<1x128x128xbf16> to vector<128x128xbf16>
    %cst_35 = arith.constant dense<0.000000e+00> : vector<16x128xf32>
    %56 = tpu.matmul %53, %55, %cst_35 {dimension_numbers = #tpu.dot_dimension_numbers<[1], [0], [0], [1], [0, 0, 1, 1], [], []>} : vector<16x128xbf16>, vector<128x128xbf16>, vector<16x128xf32> -> vector<16x128xf32>
    %57 = arith.addf %51, %56 : vector<16x128xf32>
    %cst_36 = arith.constant dense<0.000000e+00> : vector<128xf32>
    %58 = vector.multi_reduction <add>, %57, %cst_36 [0] : vector<16x128xf32> to vector<128xf32>
    %59 = vector.shape_cast %58 : vector<128xf32> to vector<1x128xf32>
    %60 = arith.mulf %57, %57 : vector<16x128xf32>
    %cst_37 = arith.constant dense<0.000000e+00> : vector<128xf32>
    %61 = vector.multi_reduction <add>, %60, %cst_37 [0] : vector<16x128xf32> to vector<128xf32>
    %62 = vector.shape_cast %61 : vector<128xf32> to vector<1x128xf32>
    %c16_i32 = arith.constant 16 : i32
    %63 = tpu.dynamic_rotate %59 by %c16_i32 dim 1 : vector<1x128xf32>, i32 -> vector<1x128xf32>
    %64 = arith.addf %59, %63 : vector<1x128xf32>
    %c16_i32_38 = arith.constant 16 : i32
    %65 = tpu.dynamic_rotate %62 by %c16_i32_38 dim 1 : vector<1x128xf32>, i32 -> vector<1x128xf32>
    %66 = arith.addf %62, %65 : vector<1x128xf32>
    %c32_i32 = arith.constant 32 : i32
    %67 = tpu.dynamic_rotate %64 by %c32_i32 dim 1 : vector<1x128xf32>, i32 -> vector<1x128xf32>
    %68 = arith.addf %64, %67 : vector<1x128xf32>
    %c32_i32_39 = arith.constant 32 : i32
    %69 = tpu.dynamic_rotate %66 by %c32_i32_39 dim 1 : vector<1x128xf32>, i32 -> vector<1x128xf32>
    %70 = arith.addf %66, %69 : vector<1x128xf32>
    %c64_i32 = arith.constant 64 : i32
    %71 = tpu.dynamic_rotate %68 by %c64_i32 dim 1 : vector<1x128xf32>, i32 -> vector<1x128xf32>
    %72 = arith.addf %68, %71 : vector<1x128xf32>
    %c64_i32_40 = arith.constant 64 : i32
    %73 = tpu.dynamic_rotate %70 by %c64_i32_40 dim 1 : vector<1x128xf32>, i32 -> vector<1x128xf32>
    %74 = arith.addf %70, %73 : vector<1x128xf32>
    %cst_41 = arith.constant 7.812500e-03 : f32
    %75 = vector.broadcast %cst_41 : f32 to vector<1x128xf32>
    %76 = arith.mulf %72, %75 : vector<1x128xf32>
    %cst_42 = arith.constant 7.812500e-03 : f32
    %77 = vector.broadcast %cst_42 : f32 to vector<1x128xf32>
    %78 = arith.mulf %74, %77 : vector<1x128xf32>
    %79 = arith.mulf %76, %76 : vector<1x128xf32>
    %80 = arith.subf %78, %79 : vector<1x128xf32>
    %81 = vector.extract_strided_slice %1 {offsets = [0, 0], sizes = [1, 128], strides = [1, 1]} : vector<8x128xf32> to vector<1x128xf32>
    %82 = vector.extract_strided_slice %1 {offsets = [1, 0], sizes = [1, 128], strides = [1, 1]} : vector<8x128xf32> to vector<1x128xf32>
    %83 = vector.broadcast %76 : vector<1x128xf32> to vector<16x128xf32>
    %84 = arith.subf %57, %83 : vector<16x128xf32>
    %cst_43 = arith.constant 9.99999974E-6 : f32
    %85 = vector.broadcast %cst_43 : f32 to vector<1x128xf32>
    %86 = arith.addf %80, %85 : vector<1x128xf32>
    %87 = math.rsqrt %86 : vector<1x128xf32>
    %88 = vector.broadcast %87 : vector<1x128xf32> to vector<16x128xf32>
    %89 = arith.mulf %84, %88 : vector<16x128xf32>
    %90 = vector.broadcast %81 : vector<1x128xf32> to vector<16x128xf32>
    %91 = arith.mulf %89, %90 : vector<16x128xf32>
    %92 = vector.broadcast %82 : vector<1x128xf32> to vector<16x128xf32>
    %93 = arith.addf %91, %92 : vector<16x128xf32>
    %cst_44 = arith.constant 0.000000e+00 : f32
    %94 = vector.broadcast %cst_44 : f32 to vector<16x128xf32>
    %95 = arith.maximumf %93, %94 : vector<16x128xf32>
    %96 = arith.truncf %95 : vector<16x128xf32> to vector<16x128xbf16>
    %c2_45 = arith.constant 2 : index
    %c0_46 = arith.constant 0 : index
    %c0_47 = arith.constant 0 : index
    %97 = vector.load %arg2[%c2_45, %c0_46, %c0_47] : memref<5x128x64xbf16, #tpu.memory_space<vmem>>, vector<1x128x64xbf16>
    %98 = vector.shape_cast %97 : vector<1x128x64xbf16> to vector<128x64xbf16>
    %99 = vector.extract_strided_slice %98 {offsets = [0, 0], sizes = [32, 16], strides = [1, 1]} : vector<128x64xbf16> to vector<32x16xbf16>
    %cst_48 = arith.constant dense<0.000000e+00> : vector<32x128xf32>
    %100 = tpu.matmul %99, %96, %cst_48 {dimension_numbers = #tpu.dot_dimension_numbers<[1], [0], [0], [1], [0, 0, 1, 1], [], []>} : vector<32x16xbf16>, vector<16x128xbf16>, vector<32x128xf32> -> vector<32x128xf32>
    %101 = vector.extract_strided_slice %100 {offsets = [0, 0], sizes = [8, 128], strides = [1, 1]} : vector<32x128xf32> to vector<8x128xf32>
    %102 = arith.truncf %101 : vector<8x128xf32> to vector<8x128xbf16>
    %c8 = arith.constant 8 : index
    %c0_49 = arith.constant 0 : index
    %c0_50 = arith.constant 0 : index
    %103 = vector.load %arg3[%c8, %c0_49, %c0_50] : memref<20x128x128xbf16, #tpu.memory_space<vmem>>, vector<1x128x128xbf16>
    %104 = vector.shape_cast %103 : vector<1x128x128xbf16> to vector<128x128xbf16>
    %cst_51 = arith.constant dense<0.000000e+00> : vector<8x128xf32>
    %105 = tpu.matmul %102, %104, %cst_51 {dimension_numbers = #tpu.dot_dimension_numbers<[1], [0], [0], [1], [0, 0, 1, 1], [], []>} : vector<8x128xbf16>, vector<128x128xbf16>, vector<8x128xf32> -> vector<8x128xf32>
    %106 = vector.extract_strided_slice %100 {offsets = [8, 0], sizes = [8, 128], strides = [1, 1]} : vector<32x128xf32> to vector<8x128xf32>
    %107 = arith.truncf %106 : vector<8x128xf32> to vector<8x128xbf16>
    %c9 = arith.constant 9 : index
    %c0_52 = arith.constant 0 : index
    %c0_53 = arith.constant 0 : index
    %108 = vector.load %arg3[%c9, %c0_52, %c0_53] : memref<20x128x128xbf16, #tpu.memory_space<vmem>>, vector<1x128x128xbf16>
    %109 = vector.shape_cast %108 : vector<1x128x128xbf16> to vector<128x128xbf16>
    %cst_54 = arith.constant dense<0.000000e+00> : vector<8x128xf32>
    %110 = tpu.matmul %107, %109, %cst_54 {dimension_numbers = #tpu.dot_dimension_numbers<[1], [0], [0], [1], [0, 0, 1, 1], [], []>} : vector<8x128xbf16>, vector<128x128xbf16>, vector<8x128xf32> -> vector<8x128xf32>
    %111 = arith.addf %105, %110 : vector<8x128xf32>
    %112 = vector.extract_strided_slice %100 {offsets = [16, 0], sizes = [8, 128], strides = [1, 1]} : vector<32x128xf32> to vector<8x128xf32>
    %113 = arith.truncf %112 : vector<8x128xf32> to vector<8x128xbf16>
    %c10 = arith.constant 10 : index
    %c0_55 = arith.constant 0 : index
    %c0_56 = arith.constant 0 : index
    %114 = vector.load %arg3[%c10, %c0_55, %c0_56] : memref<20x128x128xbf16, #tpu.memory_space<vmem>>, vector<1x128x128xbf16>
    %115 = vector.shape_cast %114 : vector<1x128x128xbf16> to vector<128x128xbf16>
    %cst_57 = arith.constant dense<0.000000e+00> : vector<8x128xf32>
    %116 = tpu.matmul %113, %115, %cst_57 {dimension_numbers = #tpu.dot_dimension_numbers<[1], [0], [0], [1], [0, 0, 1, 1], [], []>} : vector<8x128xbf16>, vector<128x128xbf16>, vector<8x128xf32> -> vector<8x128xf32>
    %117 = arith.addf %111, %116 : vector<8x128xf32>
    %118 = vector.extract_strided_slice %100 {offsets = [24, 0], sizes = [8, 128], strides = [1, 1]} : vector<32x128xf32> to vector<8x128xf32>
    %119 = arith.truncf %118 : vector<8x128xf32> to vector<8x128xbf16>
    %c11 = arith.constant 11 : index
    %c0_58 = arith.constant 0 : index
    %c0_59 = arith.constant 0 : index
    %120 = vector.load %arg3[%c11, %c0_58, %c0_59] : memref<20x128x128xbf16, #tpu.memory_space<vmem>>, vector<1x128x128xbf16>
    %121 = vector.shape_cast %120 : vector<1x128x128xbf16> to vector<128x128xbf16>
    %cst_60 = arith.constant dense<0.000000e+00> : vector<8x128xf32>
    %122 = tpu.matmul %119, %121, %cst_60 {dimension_numbers = #tpu.dot_dimension_numbers<[1], [0], [0], [1], [0, 0, 1, 1], [], []>} : vector<8x128xbf16>, vector<128x128xbf16>, vector<8x128xf32> -> vector<8x128xf32>
    %123 = arith.addf %117, %122 : vector<8x128xf32>
    %cst_61 = arith.constant dense<0.000000e+00> : vector<128xf32>
    %124 = vector.multi_reduction <add>, %123, %cst_61 [0] : vector<8x128xf32> to vector<128xf32>
    %125 = vector.shape_cast %124 : vector<128xf32> to vector<1x128xf32>
    %126 = arith.mulf %123, %123 : vector<8x128xf32>
    %cst_62 = arith.constant dense<0.000000e+00> : vector<128xf32>
    %127 = vector.multi_reduction <add>, %126, %cst_62 [0] : vector<8x128xf32> to vector<128xf32>
    %128 = vector.shape_cast %127 : vector<128xf32> to vector<1x128xf32>
    %c32_i32_63 = arith.constant 32 : i32
    %129 = tpu.dynamic_rotate %125 by %c32_i32_63 dim 1 : vector<1x128xf32>, i32 -> vector<1x128xf32>
    %130 = arith.addf %125, %129 : vector<1x128xf32>
    %c32_i32_64 = arith.constant 32 : i32
    %131 = tpu.dynamic_rotate %128 by %c32_i32_64 dim 1 : vector<1x128xf32>, i32 -> vector<1x128xf32>
    %132 = arith.addf %128, %131 : vector<1x128xf32>
    %c64_i32_65 = arith.constant 64 : i32
    %133 = tpu.dynamic_rotate %130 by %c64_i32_65 dim 1 : vector<1x128xf32>, i32 -> vector<1x128xf32>
    %134 = arith.addf %130, %133 : vector<1x128xf32>
    %c64_i32_66 = arith.constant 64 : i32
    %135 = tpu.dynamic_rotate %132 by %c64_i32_66 dim 1 : vector<1x128xf32>, i32 -> vector<1x128xf32>
    %136 = arith.addf %132, %135 : vector<1x128xf32>
    %cst_67 = arith.constant 3.125000e-02 : f32
    %137 = vector.broadcast %cst_67 : f32 to vector<1x128xf32>
    %138 = arith.mulf %134, %137 : vector<1x128xf32>
    %cst_68 = arith.constant 3.125000e-02 : f32
    %139 = vector.broadcast %cst_68 : f32 to vector<1x128xf32>
    %140 = arith.mulf %136, %139 : vector<1x128xf32>
    %141 = arith.mulf %138, %138 : vector<1x128xf32>
    %142 = arith.subf %140, %141 : vector<1x128xf32>
    %143 = vector.extract_strided_slice %1 {offsets = [2, 0], sizes = [1, 128], strides = [1, 1]} : vector<8x128xf32> to vector<1x128xf32>
    %144 = vector.extract_strided_slice %1 {offsets = [3, 0], sizes = [1, 128], strides = [1, 1]} : vector<8x128xf32> to vector<1x128xf32>
    %145 = vector.broadcast %138 : vector<1x128xf32> to vector<8x128xf32>
    %146 = arith.subf %123, %145 : vector<8x128xf32>
    %cst_69 = arith.constant 9.99999974E-6 : f32
    %147 = vector.broadcast %cst_69 : f32 to vector<1x128xf32>
    %148 = arith.addf %142, %147 : vector<1x128xf32>
    %149 = math.rsqrt %148 : vector<1x128xf32>
    %150 = vector.broadcast %149 : vector<1x128xf32> to vector<8x128xf32>
    %151 = arith.mulf %146, %150 : vector<8x128xf32>
    %152 = vector.broadcast %143 : vector<1x128xf32> to vector<8x128xf32>
    %153 = arith.mulf %151, %152 : vector<8x128xf32>
    %154 = vector.broadcast %144 : vector<1x128xf32> to vector<8x128xf32>
    %155 = arith.addf %153, %154 : vector<8x128xf32>
    %cst_70 = arith.constant 0.000000e+00 : f32
    %156 = vector.broadcast %cst_70 : f32 to vector<8x128xf32>
    %157 = arith.maximumf %155, %156 : vector<8x128xf32>
    %158 = arith.truncf %157 : vector<8x128xf32> to vector<8x128xbf16>
    %c3_71 = arith.constant 3 : index
    %c0_72 = arith.constant 0 : index
    %c0_73 = arith.constant 0 : index
    %159 = vector.load %arg2[%c3_71, %c0_72, %c0_73] : memref<5x128x64xbf16, #tpu.memory_space<vmem>>, vector<1x128x64xbf16>
    %160 = vector.shape_cast %159 : vector<1x128x64xbf16> to vector<128x64xbf16>
    %161 = vector.extract_strided_slice %160 {offsets = [0, 0], sizes = [32, 8], strides = [1, 1]} : vector<128x64xbf16> to vector<32x8xbf16>
    %cst_74 = arith.constant dense<0.000000e+00> : vector<32x128xf32>
    %162 = tpu.matmul %161, %158, %cst_74 {dimension_numbers = #tpu.dot_dimension_numbers<[1], [0], [0], [1], [0, 0, 1, 1], [], []>} : vector<32x8xbf16>, vector<8x128xbf16>, vector<32x128xf32> -> vector<32x128xf32>
    %163 = vector.extract_strided_slice %162 {offsets = [0, 0], sizes = [8, 128], strides = [1, 1]} : vector<32x128xf32> to vector<8x128xf32>
    %164 = arith.truncf %163 : vector<8x128xf32> to vector<8x128xbf16>
    %c12 = arith.constant 12 : index
    %c0_75 = arith.constant 0 : index
    %c0_76 = arith.constant 0 : index
    %165 = vector.load %arg3[%c12, %c0_75, %c0_76] : memref<20x128x128xbf16, #tpu.memory_space<vmem>>, vector<1x128x128xbf16>
    %166 = vector.shape_cast %165 : vector<1x128x128xbf16> to vector<128x128xbf16>
    %cst_77 = arith.constant dense<0.000000e+00> : vector<8x128xf32>
    %167 = tpu.matmul %164, %166, %cst_77 {dimension_numbers = #tpu.dot_dimension_numbers<[1], [0], [0], [1], [0, 0, 1, 1], [], []>} : vector<8x128xbf16>, vector<128x128xbf16>, vector<8x128xf32> -> vector<8x128xf32>
    %168 = vector.extract_strided_slice %162 {offsets = [8, 0], sizes = [8, 128], strides = [1, 1]} : vector<32x128xf32> to vector<8x128xf32>
    %169 = arith.truncf %168 : vector<8x128xf32> to vector<8x128xbf16>
    %c13 = arith.constant 13 : index
    %c0_78 = arith.constant 0 : index
    %c0_79 = arith.constant 0 : index
    %170 = vector.load %arg3[%c13, %c0_78, %c0_79] : memref<20x128x128xbf16, #tpu.memory_space<vmem>>, vector<1x128x128xbf16>
    %171 = vector.shape_cast %170 : vector<1x128x128xbf16> to vector<128x128xbf16>
    %cst_80 = arith.constant dense<0.000000e+00> : vector<8x128xf32>
    %172 = tpu.matmul %169, %171, %cst_80 {dimension_numbers = #tpu.dot_dimension_numbers<[1], [0], [0], [1], [0, 0, 1, 1], [], []>} : vector<8x128xbf16>, vector<128x128xbf16>, vector<8x128xf32> -> vector<8x128xf32>
    %173 = arith.addf %167, %172 : vector<8x128xf32>
    %174 = vector.extract_strided_slice %162 {offsets = [16, 0], sizes = [8, 128], strides = [1, 1]} : vector<32x128xf32> to vector<8x128xf32>
    %175 = arith.truncf %174 : vector<8x128xf32> to vector<8x128xbf16>
    %c14 = arith.constant 14 : index
    %c0_81 = arith.constant 0 : index
    %c0_82 = arith.constant 0 : index
    %176 = vector.load %arg3[%c14, %c0_81, %c0_82] : memref<20x128x128xbf16, #tpu.memory_space<vmem>>, vector<1x128x128xbf16>
    %177 = vector.shape_cast %176 : vector<1x128x128xbf16> to vector<128x128xbf16>
    %cst_83 = arith.constant dense<0.000000e+00> : vector<8x128xf32>
    %178 = tpu.matmul %175, %177, %cst_83 {dimension_numbers = #tpu.dot_dimension_numbers<[1], [0], [0], [1], [0, 0, 1, 1], [], []>} : vector<8x128xbf16>, vector<128x128xbf16>, vector<8x128xf32> -> vector<8x128xf32>
    %179 = arith.addf %173, %178 : vector<8x128xf32>
    %180 = vector.extract_strided_slice %162 {offsets = [24, 0], sizes = [8, 128], strides = [1, 1]} : vector<32x128xf32> to vector<8x128xf32>
    %181 = arith.truncf %180 : vector<8x128xf32> to vector<8x128xbf16>
    %c15 = arith.constant 15 : index
    %c0_84 = arith.constant 0 : index
    %c0_85 = arith.constant 0 : index
    %182 = vector.load %arg3[%c15, %c0_84, %c0_85] : memref<20x128x128xbf16, #tpu.memory_space<vmem>>, vector<1x128x128xbf16>
    %183 = vector.shape_cast %182 : vector<1x128x128xbf16> to vector<128x128xbf16>
    %cst_86 = arith.constant dense<0.000000e+00> : vector<8x128xf32>
    %184 = tpu.matmul %181, %183, %cst_86 {dimension_numbers = #tpu.dot_dimension_numbers<[1], [0], [0], [1], [0, 0, 1, 1], [], []>} : vector<8x128xbf16>, vector<128x128xbf16>, vector<8x128xf32> -> vector<8x128xf32>
    %185 = arith.addf %179, %184 : vector<8x128xf32>
    %cst_87 = arith.constant dense<0.000000e+00> : vector<128xf32>
    %186 = vector.multi_reduction <add>, %185, %cst_87 [0] : vector<8x128xf32> to vector<128xf32>
    %187 = vector.shape_cast %186 : vector<128xf32> to vector<1x128xf32>
    %188 = arith.mulf %185, %185 : vector<8x128xf32>
    %cst_88 = arith.constant dense<0.000000e+00> : vector<128xf32>
    %189 = vector.multi_reduction <add>, %188, %cst_88 [0] : vector<8x128xf32> to vector<128xf32>
    %190 = vector.shape_cast %189 : vector<128xf32> to vector<1x128xf32>
    %c64_i32_89 = arith.constant 64 : i32
    %191 = tpu.dynamic_rotate %187 by %c64_i32_89 dim 1 : vector<1x128xf32>, i32 -> vector<1x128xf32>
    %192 = arith.addf %187, %191 : vector<1x128xf32>
    %c64_i32_90 = arith.constant 64 : i32
    %193 = tpu.dynamic_rotate %190 by %c64_i32_90 dim 1 : vector<1x128xf32>, i32 -> vector<1x128xf32>
    %194 = arith.addf %190, %193 : vector<1x128xf32>
    %cst_91 = arith.constant 1.250000e-01 : f32
    %195 = vector.broadcast %cst_91 : f32 to vector<1x128xf32>
    %196 = arith.mulf %192, %195 : vector<1x128xf32>
    %cst_92 = arith.constant 1.250000e-01 : f32
    %197 = vector.broadcast %cst_92 : f32 to vector<1x128xf32>
    %198 = arith.mulf %194, %197 : vector<1x128xf32>
    %199 = arith.mulf %196, %196 : vector<1x128xf32>
    %200 = arith.subf %198, %199 : vector<1x128xf32>
    %201 = vector.extract_strided_slice %1 {offsets = [4, 0], sizes = [1, 128], strides = [1, 1]} : vector<8x128xf32> to vector<1x128xf32>
    %202 = vector.extract_strided_slice %1 {offsets = [5, 0], sizes = [1, 128], strides = [1, 1]} : vector<8x128xf32> to vector<1x128xf32>
    %203 = vector.broadcast %196 : vector<1x128xf32> to vector<8x128xf32>
    %204 = arith.subf %185, %203 : vector<8x128xf32>
    %cst_93 = arith.constant 9.99999974E-6 : f32
    %205 = vector.broadcast %cst_93 : f32 to vector<1x128xf32>
    %206 = arith.addf %200, %205 : vector<1x128xf32>
    %207 = math.rsqrt %206 : vector<1x128xf32>
    %208 = vector.broadcast %207 : vector<1x128xf32> to vector<8x128xf32>
    %209 = arith.mulf %204, %208 : vector<8x128xf32>
    %210 = vector.broadcast %201 : vector<1x128xf32> to vector<8x128xf32>
    %211 = arith.mulf %209, %210 : vector<8x128xf32>
    %212 = vector.broadcast %202 : vector<1x128xf32> to vector<8x128xf32>
    %213 = arith.addf %211, %212 : vector<8x128xf32>
    %cst_94 = arith.constant 0.000000e+00 : f32
    %214 = vector.broadcast %cst_94 : f32 to vector<8x128xf32>
    %215 = arith.maximumf %213, %214 : vector<8x128xf32>
    %216 = arith.truncf %215 : vector<8x128xf32> to vector<8x128xbf16>
    %c4_95 = arith.constant 4 : index
    %c0_96 = arith.constant 0 : index
    %c0_97 = arith.constant 0 : index
    %217 = vector.load %arg2[%c4_95, %c0_96, %c0_97] : memref<5x128x64xbf16, #tpu.memory_space<vmem>>, vector<1x128x64xbf16>
    %218 = vector.shape_cast %217 : vector<1x128x64xbf16> to vector<128x64xbf16>
    %219 = vector.extract_strided_slice %218 {offsets = [0, 0], sizes = [32, 8], strides = [1, 1]} : vector<128x64xbf16> to vector<32x8xbf16>
    %cst_98 = arith.constant dense<0.000000e+00> : vector<32x128xf32>
    %220 = tpu.matmul %219, %216, %cst_98 {dimension_numbers = #tpu.dot_dimension_numbers<[1], [0], [0], [1], [0, 0, 1, 1], [], []>} : vector<32x8xbf16>, vector<8x128xbf16>, vector<32x128xf32> -> vector<32x128xf32>
    %221 = vector.extract_strided_slice %220 {offsets = [8, 0], sizes = [8, 128], strides = [1, 1]} : vector<32x128xf32> to vector<8x128xf32>
    %222 = arith.truncf %221 : vector<8x128xf32> to vector<8x128xbf16>
    %c17 = arith.constant 17 : index
    %c0_99 = arith.constant 0 : index
    %c0_100 = arith.constant 0 : index
    %223 = vector.load %arg3[%c17, %c0_99, %c0_100] : memref<20x128x128xbf16, #tpu.memory_space<vmem>>, vector<1x128x128xbf16>
    %224 = vector.shape_cast %223 : vector<1x128x128xbf16> to vector<128x128xbf16>
    %cst_101 = arith.constant dense<0.000000e+00> : vector<8x128xf32>
    %225 = tpu.matmul %222, %224, %cst_101 {dimension_numbers = #tpu.dot_dimension_numbers<[1], [0], [0], [1], [0, 0, 1, 1], [], []>} : vector<8x128xbf16>, vector<128x128xbf16>, vector<8x128xf32> -> vector<8x128xf32>
    %226 = vector.extract_strided_slice %220 {offsets = [16, 0], sizes = [8, 128], strides = [1, 1]} : vector<32x128xf32> to vector<8x128xf32>
    %227 = arith.truncf %226 : vector<8x128xf32> to vector<8x128xbf16>
    %c18 = arith.constant 18 : index
    %c0_102 = arith.constant 0 : index
    %c0_103 = arith.constant 0 : index
    %228 = vector.load %arg3[%c18, %c0_102, %c0_103] : memref<20x128x128xbf16, #tpu.memory_space<vmem>>, vector<1x128x128xbf16>
    %229 = vector.shape_cast %228 : vector<1x128x128xbf16> to vector<128x128xbf16>
    %cst_104 = arith.constant dense<0.000000e+00> : vector<8x128xf32>
    %230 = tpu.matmul %227, %229, %cst_104 {dimension_numbers = #tpu.dot_dimension_numbers<[1], [0], [0], [1], [0, 0, 1, 1], [], []>} : vector<8x128xbf16>, vector<128x128xbf16>, vector<8x128xf32> -> vector<8x128xf32>
    %231 = arith.addf %225, %230 : vector<8x128xf32>
    %c0_105 = arith.constant 0 : index
    %c0_106 = arith.constant 0 : index
    %232 = vector.load %arg5[%c0_105, %c0_106] : memref<8x128xf32, #tpu.memory_space<vmem>>, vector<8x128xf32>
    tpu.vector_store %arg5[%c0_105, %c0_106], %231 {strides = array<i32>} : memref<8x128xf32, #tpu.memory_space<vmem>>, vector<8x128xf32>,
    return
  }
  func.func @transform_0(%arg0: i32) -> (i32, i32) {
    %c0_i32 = arith.constant 0 : i32
    %c0_i32_0 = arith.constant 0 : i32
    %c0_i32_1 = arith.constant 0 : i32
    return %c0_i32, %c0_i32_0 : i32, i32
  }
  func.func @transform_1(%arg0: i32) -> (i32, i32, i32) {
    %c0_i32 = arith.constant 0 : i32
    %c0_i32_0 = arith.constant 0 : i32
    %c0_i32_1 = arith.constant 0 : i32
    %c0_i32_2 = arith.constant 0 : i32
    return %c0_i32, %c0_i32_0, %c0_i32_1 : i32, i32, i32
  }
  func.func @transform_2(%arg0: i32) -> (i32, i32, i32) {
    %c0_i32 = arith.constant 0 : i32
    %c0_i32_0 = arith.constant 0 : i32
    %c0_i32_1 = arith.constant 0 : i32
    %c0_i32_2 = arith.constant 0 : i32
    return %c0_i32, %c0_i32_0, %c0_i32_1 : i32, i32, i32
  }
  func.func @transform_3(%arg0: i32) -> (i32, i32) {
    %c0_i32 = arith.constant 0 : i32
    %c0_i32_0 = arith.constant 0 : i32
    %c0_i32_1 = arith.constant 0 : i32
    return %c0_i32, %c0_i32_0 : i32, i32
  }
  func.func @transform_4(%arg0: i32) -> (i32, i32) {
    %c0_i32 = arith.constant 0 : i32
    %c0_i32_0 = arith.constant 0 : i32
    %c0_i32_1 = arith.constant 0 : i32
    return %c0_i32, %c0_i32_0 : i32, i32
  }
}

</mosaic_0001>

<llo_original>
// kernel: forward.1
$region0: #{forward.1}
  #allocation0 [shape = 'u32[]', space=smem, size = 0x4, offset = 0x4, fixed_abs, tag = 'smem constant byte address 0x4 - core index']
  #allocation1 [shape = 'u32[72,128]{1,0:T(1,128)}', space=vmem, size = 0x9000, scoped, tag = 'internal scratch']
  %s0 = inlined_call_operand.vmem [shape: bf16[64,128], index: 0, kind: input, shape index: {}]
  %s1 = inlined_call_operand.vmem [shape: bf16[5,128,64], index: 1, kind: input, shape index: {}]
  %s2 = inlined_call_operand.hbm [shape: bf16[20,128,128], index: 2, kind: input, shape index: {}]
  %s3 = inlined_call_operand.vmem [shape: f32[8,128], index: 3, kind: input, shape index: {}]
  %s4 = inlined_call_operand.vmem [shape: f32[8,128], index: 4, kind: output, shape index: {}]
  %s5 = sld [smem:[#allocation0]]
  $region30: #{forward.1} parent=0
    _
  %s7 = ssub.s32 1, %s5
  %s8 = scalar_select 0, %s7, %s5
  $region1: #{forward.1} parent=0
    #allocation2 [shape = 'u8[655360]{0}', space=vmem, size = 0xa0000, scoped, tag = 'input window, operand 2, single buffered']
    #allocation3 [shape = 's32[1]{0}', space=sflag, size = 0x4, scoped, tag = 'scoped memory for forward.1']
    %9 = vsyncpa [#allocation3], 0
    // Predicated region
    $region2: #{forward.1} parent=1 // pred_check
      _
    $region3: #{forward.1} parent=1 // pred_check_branch
      %11 = sbr.rel (0) target = $region5
    $region4: #{forward.1} parent=1 // pred_region
      _
    $region5: #{forward.1} parent=1 // pred_fallthru
      _
    // Predicated region
    $region6: #{forward.1} parent=1 // pred_check
      _
    $region7: #{forward.1} parent=1 // pred_check_branch
      %13 = sbr.rel (0) target = $region9
    $region8: #{forward.1} parent=1 // pred_region
      _
    $region9: #{forward.1} parent=1 // pred_fallthru
      _
    // Predicated region
    $region10: #{forward.1} parent=1 // pred_check
      _
    $region11: #{forward.1} parent=1 // pred_check_branch
      %15 = sbr.rel (0) target = $region13
    $region12: #{forward.1} parent=1 // pred_region
      %17 = vsyncadd [#allocation3], 0
      %s18 = sshll.u32 %s2, 4
      %s19 = int_to_ptr.hbm [resolvable:$true] %s18
      %s20 = sshll.u32 [#allocation2], 4
      %s21 = int_to_ptr.vmem [resolvable:$true] %s20
      %26 = dma.hbm_to_vmem [thread:$0]  %s19, 20480, %s21, [#allocation3], 64, 64, 4
    $region13: #{forward.1} parent=1 // pred_fallthru
      _
    // Predicated region
    $region14: #{forward.1} parent=1 // pred_check
      _
    $region15: #{forward.1} parent=1 // pred_check_branch
      %28 = sbr.rel (0) target = $region17
    $region16: #{forward.1} parent=1 // pred_region
      _
    $region17: #{forward.1} parent=1 // pred_fallthru
      _
    // Predicated region
    $region18: #{forward.1} parent=1 // pred_check
      _
    $region19: #{forward.1} parent=1 // pred_check_branch
      %30 = sbr.rel (0) target = $region21
    $region20: #{forward.1} parent=1 // pred_region
      %32 = dma.done [#allocation3], 20480
    $region21: #{forward.1} parent=1 // pred_fallthru
      _
    %v34 = vld [vmem:[%s0] sm:$0xf]
    %v35 = vld [vmem:[%s0 + $0x4] sm:$0xf]
    %v36 = vld [vmem:[%s0 + $0x8] sm:$0xf]
    %v37 = vld [vmem:[%s0 + $0xc] sm:$0xf]
    %v38 = vld [vmem:[%s0 + $0x10] sm:$0xf]
    %v39 = vld [vmem:[%s0 + $0x14] sm:$0xf]
    %v40 = vld [vmem:[%s0 + $0x18] sm:$0xf]
    %v41 = vld [vmem:[%s0 + $0x1c] sm:$0xf]
    %v42 = vld [vmem:[%s3] sm:$0xff]
    %v43 = vld [vmem:[%s1] sm:$0xf]
    %v44 = vld [vmem:[%s1 + $0x4] sm:$0xf]
    %v45 = vld [vmem:[%s1 + $0x8] sm:$0xf]
    %v46 = vld [vmem:[%s1 + $0xc] sm:$0xf]
    %v47 = vld [vmem:[%s1 + $0x10] sm:$0xf]
    %v48 = vld [vmem:[%s1 + $0x14] sm:$0xf]
    %v49 = vld [vmem:[%s1 + $0x18] sm:$0xf]
    %v50 = vld [vmem:[%s1 + $0x1c] sm:$0xf]
    %v51 = vld [vmem:[%s1 + $0x20] sm:$0xf]
    %v52 = vld [vmem:[%s1 + $0x24] sm:$0xf]
    %v53 = vld [vmem:[%s1 + $0x28] sm:$0xf]
    %v54 = vld [vmem:[%s1 + $0x2c] sm:$0xf]
    %v55 = vld [vmem:[%s1 + $0x30] sm:$0xf]
    %v56 = vld [vmem:[%s1 + $0x34] sm:$0xf]
    %v57 = vld [vmem:[%s1 + $0x38] sm:$0xf]
    %v58 = vld [vmem:[%s1 + $0x3c] sm:$0xf]
    %v75 = vunpack.c.l.b16 %v43
    %v76 = vunpack.c.l.b16 %v44
    %v77 = vunpack.c.l.b16 %v45
    %v78 = vunpack.c.l.b16 %v46
    %v79 = vunpack.c.l.b16 %v47
    %v80 = vunpack.c.l.b16 %v48
    %v81 = vunpack.c.l.b16 %v49
    %v82 = vunpack.c.l.b16 %v50
    %v83 = vunpack.c.l.b16 %v51
    %v84 = vunpack.c.l.b16 %v52
    %v85 = vunpack.c.l.b16 %v53
    %v86 = vunpack.c.l.b16 %v54
    %v87 = vunpack.c.l.b16 %v55
    %v88 = vunpack.c.l.b16 %v56
    %v89 = vunpack.c.l.b16 %v57
    %v90 = vunpack.c.l.b16 %v58
    %v91 = vpack.c.b16 %v76, %v75
    %v92 = vpack.c.b16 %v78, %v77
    %v93 = vpack.c.b16 %v80, %v79
    %v94 = vpack.c.b16 %v82, %v81
    %v95 = vpack.c.b16 %v84, %v83
    %v96 = vpack.c.b16 %v86, %v85
    %v97 = vpack.c.b16 %v88, %v87
    %v98 = vpack.c.b16 %v90, %v89
    %v107 = vunpack.c.l.b16 %v34
    %v108 = vunpack.c.l.b16 %v35
    %v109 = vunpack.c.l.b16 %v36
    %v110 = vunpack.c.l.b16 %v37
    %v111 = vunpack.c.l.b16 %v38
    %v112 = vunpack.c.l.b16 %v39
    %v113 = vunpack.c.l.b16 %v40
    %v114 = vunpack.c.l.b16 %v41
    %v115 = vpack.c.b16 %v108, %v107
    %v116 = vpack.c.b16 %v110, %v109
    %v117 = vpack.c.b16 %v112, %v111
    %v118 = vpack.c.b16 %v114, %v113
    %vm123 = vcmask 523264
    %v125 = vsel %vm123, %v91, 0
    %v128 = vsel %vm123, %v92, 0
    %v131 = vsel %vm123, %v93, 0
    %v134 = vsel %vm123, %v94, 0
    %v137 = vsel %vm123, %v95, 0
    %v140 = vsel %vm123, %v96, 0
    %v143 = vsel %vm123, %v97, 0
    %v146 = vsel %vm123, %v98, 0
    %148 = vmatpush.bf16.msra.mxu0 0
    %149 = vmatpush.bf16.msra.mxu0 0
    %150 = vmatpush.bf16.msra.mxu0 0
    %151 = vmatpush.bf16.msra.mxu0 0
    %152 = vmatpush.bf16.msra.mxu0 %v118
    %153 = vmatpush.bf16.msra.mxu0 %v117
    %154 = vmatpush.bf16.msra.mxu0 %v116
    %155 = vmatpush.bf16.msra.mxu0 %v115
    %156 = vmatmul.bf16.gmra.mxu0 %v125
    %v157 = vpop.f32.mrf.mxu0
    %v158 = vadd.f32 0.0, %v157
    %v159 = vpop.f32.mrf.mxu0
    %v160 = vadd.f32 0.0, %v159
    %161 = vmatmul.bf16.gmra.mxu0 %v128
    %v162 = vpop.f32.mrf.mxu0
    %v163 = vadd.f32 0.0, %v162
    %v164 = vpop.f32.mrf.mxu0
    %v165 = vadd.f32 0.0, %v164
    %166 = vmatmul.bf16.gmra.mxu0 %v131
    %v167 = vpop.f32.mrf.mxu0
    %v168 = vadd.f32 0.0, %v167
    %v169 = vpop.f32.mrf.mxu0
    %v170 = vadd.f32 0.0, %v169
    %171 = vmatmul.bf16.gmra.mxu0 %v134
    %v172 = vpop.f32.mrf.mxu0
    %v173 = vadd.f32 0.0, %v172
    %v174 = vpop.f32.mrf.mxu0
    %v175 = vadd.f32 0.0, %v174
    %176 = vmatmul.bf16.gmra.mxu0 %v137
    %v177 = vpop.f32.mrf.mxu0
    %v178 = vadd.f32 0.0, %v177
    %v179 = vpop.f32.mrf.mxu0
    %v180 = vadd.f32 0.0, %v179
    %181 = vmatmul.bf16.gmra.mxu0 %v140
    %v182 = vpop.f32.mrf.mxu0
    %v183 = vadd.f32 0.0, %v182
    %v184 = vpop.f32.mrf.mxu0
    %v185 = vadd.f32 0.0, %v184
    %186 = vmatmul.bf16.gmra.mxu0 %v143
    %v187 = vpop.f32.mrf.mxu0
    %v188 = vadd.f32 0.0, %v187
    %v189 = vpop.f32.mrf.mxu0
    %v190 = vadd.f32 0.0, %v189
    %191 = vmatmul.bf16.gmra.mxu0 %v146
    %v192 = vpop.f32.mrf.mxu0
    %v193 = vadd.f32 0.0, %v192
    %v194 = vpop.f32.mrf.mxu0
    %v195 = vadd.f32 0.0, %v194
    %196 = vdwg.mxu0
    %v197 = vpack.c.bf16 %v160, %v158
    %v198 = vpack.c.bf16 %v165, %v163
    %v199 = vld [vmem:[#allocation2] sm:$0xf]
    %v200 = vld [vmem:[#allocation2 + $0x4] sm:$0xf]
    %v201 = vld [vmem:[#allocation2 + $0x8] sm:$0xf]
    %v202 = vld [vmem:[#allocation2 + $0xc] sm:$0xf]
    %v203 = vld [vmem:[#allocation2 + $0x10] sm:$0xf]
    %v204 = vld [vmem:[#allocation2 + $0x14] sm:$0xf]
    %v205 = vld [vmem:[#allocation2 + $0x18] sm:$0xf]
    %v206 = vld [vmem:[#allocation2 + $0x1c] sm:$0xf]
    %v207 = vld [vmem:[#allocation2 + $0x20] sm:$0xf]
    %v208 = vld [vmem:[#allocation2 + $0x24] sm:$0xf]
    %v209 = vld [vmem:[#allocation2 + $0x28] sm:$0xf]
    %v210 = vld [vmem:[#allocation2 + $0x2c] sm:$0xf]
    %v211 = vld [vmem:[#allocation2 + $0x30] sm:$0xf]
    %v212 = vld [vmem:[#allocation2 + $0x34] sm:$0xf]
    %v213 = vld [vmem:[#allocation2 + $0x38] sm:$0xf]
    %v214 = vld [vmem:[#allocation2 + $0x3c] sm:$0xf]
    %v215 = vpack.c.bf16 %v170, %v168
    %v216 = vpack.c.bf16 %v175, %v173
    %s217 = scalar_lea.vmem [#allocation2], 64
    %v218 = vld [vmem:[%s217] sm:$0xf]
    %v219 = vld [vmem:[%s217 + $0x4] sm:$0xf]
    %v220 = vld [vmem:[%s217 + $0x8] sm:$0xf]
    %v221 = vld [vmem:[%s217 + $0xc] sm:$0xf]
    %v222 = vld [vmem:[%s217 + $0x10] sm:$0xf]
    %v223 = vld [vmem:[%s217 + $0x14] sm:$0xf]
    %v224 = vld [vmem:[%s217 + $0x18] sm:$0xf]
    %v225 = vld [vmem:[%s217 + $0x1c] sm:$0xf]
    %v226 = vld [vmem:[%s217 + $0x20] sm:$0xf]
    %v227 = vld [vmem:[%s217 + $0x24] sm:$0xf]
    %v228 = vld [vmem:[%s217 + $0x28] sm:$0xf]
    %v229 = vld [vmem:[%s217 + $0x2c] sm:$0xf]
    %v230 = vld [vmem:[%s217 + $0x30] sm:$0xf]
    %v231 = vld [vmem:[%s217 + $0x34] sm:$0xf]
    %v232 = vld [vmem:[%s217 + $0x38] sm:$0xf]
    %v233 = vld [vmem:[%s217 + $0x3c] sm:$0xf]
    %v250 = vunpack.c.l.b16 %v218
    %v251 = vunpack.c.l.b16 %v219
    %v252 = vunpack.c.l.b16 %v220
    %v253 = vunpack.c.l.b16 %v221
    %v254 = vunpack.c.l.b16 %v222
    %v255 = vunpack.c.l.b16 %v223
    %v256 = vunpack.c.l.b16 %v224
    %v257 = vunpack.c.l.b16 %v225
    %v258 = vunpack.c.l.b16 %v226
    %v259 = vunpack.c.l.b16 %v227
    %v260 = vunpack.c.l.b16 %v228
    %v261 = vunpack.c.l.b16 %v229
    %v262 = vunpack.c.l.b16 %v230
    %v263 = vunpack.c.l.b16 %v231
    %v264 = vunpack.c.l.b16 %v232
    %v265 = vunpack.c.l.b16 %v233
    %v266 = vpack.c.b16 %v251, %v250
    %v267 = vpack.c.b16 %v253, %v252
    %v268 = vpack.c.b16 %v255, %v254
    %v269 = vpack.c.b16 %v257, %v256
    %v270 = vpack.c.b16 %v259, %v258
    %v271 = vpack.c.b16 %v261, %v260
    %v272 = vpack.c.b16 %v263, %v262
    %v273 = vpack.c.b16 %v265, %v264
    %282 = vmatpush.bf16.msra.mxu0 %v273
    %283 = vmatpush.bf16.msra.mxu0 %v272
    %284 = vmatpush.bf16.msra.mxu0 %v271
    %285 = vmatpush.bf16.msra.mxu0 %v270
    %286 = vmatpush.bf16.msra.mxu0 %v269
    %287 = vmatpush.bf16.msra.mxu0 %v268
    %288 = vmatpush.bf16.msra.mxu0 %v267
    %289 = vmatpush.bf16.msra.mxu0 %v266
    %290 = vmatmul.bf16.gmra.mxu0 %v215
    %v291 = vpop.f32.mrf.mxu0
    %v292 = vadd.f32 0.0, %v291
    %v293 = vpop.f32.mrf.mxu0
    %v294 = vadd.f32 0.0, %v293
    %295 = vmatmul.bf16.gmra.mxu0 %v216
    %v296 = vpop.f32.mrf.mxu0
    %v297 = vadd.f32 0.0, %v296
    %v298 = vpop.f32.mrf.mxu0
    %v299 = vadd.f32 0.0, %v298
    %300 = vdwg.mxu0
    %v317 = vunpack.c.l.b16 %v199
    %v318 = vunpack.c.l.b16 %v200
    %v319 = vunpack.c.l.b16 %v201
    %v320 = vunpack.c.l.b16 %v202
    %v321 = vunpack.c.l.b16 %v203
    %v322 = vunpack.c.l.b16 %v204
    %v323 = vunpack.c.l.b16 %v205
    %v324 = vunpack.c.l.b16 %v206
    %v325 = vunpack.c.l.b16 %v207
    %v326 = vunpack.c.l.b16 %v208
    %v327 = vunpack.c.l.b16 %v209
    %v328 = vunpack.c.l.b16 %v210
    %v329 = vunpack.c.l.b16 %v211
    %v330 = vunpack.c.l.b16 %v212
    %v331 = vunpack.c.l.b16 %v213
    %v332 = vunpack.c.l.b16 %v214
    %v333 = vpack.c.b16 %v318, %v317
    %v334 = vpack.c.b16 %v320, %v319
    %v335 = vpack.c.b16 %v322, %v321
    %v336 = vpack.c.b16 %v324, %v323
    %v337 = vpack.c.b16 %v326, %v325
    %v338 = vpack.c.b16 %v328, %v327
    %v339 = vpack.c.b16 %v330, %v329
    %v340 = vpack.c.b16 %v332, %v331
    %349 = vmatpush.bf16.msra.mxu0 %v340
    %350 = vmatpush.bf16.msra.mxu0 %v339
    %351 = vmatpush.bf16.msra.mxu0 %v338
    %352 = vmatpush.bf16.msra.mxu0 %v337
    %353 = vmatpush.bf16.msra.mxu0 %v336
    %354 = vmatpush.bf16.msra.mxu0 %v335
    %355 = vmatpush.bf16.msra.mxu0 %v334
    %356 = vmatpush.bf16.msra.mxu0 %v333
    %357 = vmatmul.bf16.gmra.mxu0 %v197
    %v358 = vpop.f32.mrf.mxu0
    %v359 = vadd.f32 %v292, %v358
    %v360 = vpop.f32.mrf.mxu0
    %v361 = vadd.f32 %v294, %v360
    %362 = vmatmul.bf16.gmra.mxu0 %v198
    %v363 = vpop.f32.mrf.mxu0
    %v364 = vadd.f32 %v297, %v363
    %v365 = vpop.f32.mrf.mxu0
    %v366 = vadd.f32 %v299, %v365
    %367 = vdwg.mxu0
    %v368 = vpack.c.bf16 %v180, %v178
    %v369 = vpack.c.bf16 %v185, %v183
    %s370 = scalar_lea.vmem [#allocation2], 128
    %v371 = vld [vmem:[%s370] sm:$0xf]
    %v372 = vld [vmem:[%s370 + $0x4] sm:$0xf]
    %v373 = vld [vmem:[%s370 + $0x8] sm:$0xf]
    %v374 = vld [vmem:[%s370 + $0xc] sm:$0xf]
    %v375 = vld [vmem:[%s370 + $0x10] sm:$0xf]
    %v376 = vld [vmem:[%s370 + $0x14] sm:$0xf]
    %v377 = vld [vmem:[%s370 + $0x18] sm:$0xf]
    %v378 = vld [vmem:[%s370 + $0x1c] sm:$0xf]
    %v379 = vld [vmem:[%s370 + $0x20] sm:$0xf]
    %v380 = vld [vmem:[%s370 + $0x24] sm:$0xf]
    %v381 = vld [vmem:[%s370 + $0x28] sm:$0xf]
    %v382 = vld [vmem:[%s370 + $0x2c] sm:$0xf]
    %v383 = vld [vmem:[%s370 + $0x30] sm:$0xf]
    %v384 = vld [vmem:[%s370 + $0x34] sm:$0xf]
    %v385 = vld [vmem:[%s370 + $0x38] sm:$0xf]
    %v386 = vld [vmem:[%s370 + $0x3c] sm:$0xf]
    %v403 = vunpack.c.l.b16 %v371
    %v404 = vunpack.c.l.b16 %v372
    %v405 = vunpack.c.l.b16 %v373
    %v406 = vunpack.c.l.b16 %v374
    %v407 = vunpack.c.l.b16 %v375
    %v408 = vunpack.c.l.b16 %v376
    %v409 = vunpack.c.l.b16 %v377
    %v410 = vunpack.c.l.b16 %v378
    %v411 = vunpack.c.l.b16 %v379
    %v412 = vunpack.c.l.b16 %v380
    %v413 = vunpack.c.l.b16 %v381
    %v414 = vunpack.c.l.b16 %v382
    %v415 = vunpack.c.l.b16 %v383
    %v416 = vunpack.c.l.b16 %v384
    %v417 = vunpack.c.l.b16 %v385
    %v418 = vunpack.c.l.b16 %v386
    %v419 = vpack.c.b16 %v404, %v403
    %v420 = vpack.c.b16 %v406, %v405
    %v421 = vpack.c.b16 %v408, %v407
    %v422 = vpack.c.b16 %v410, %v409
    %v423 = vpack.c.b16 %v412, %v411
    %v424 = vpack.c.b16 %v414, %v413
    %v425 = vpack.c.b16 %v416, %v415
    %v426 = vpack.c.b16 %v418, %v417
    %435 = vmatpush.bf16.msra.mxu0 %v426
    %436 = vmatpush.bf16.msra.mxu0 %v425
    %437 = vmatpush.bf16.msra.mxu0 %v424
    %438 = vmatpush.bf16.msra.mxu0 %v423
    %439 = vmatpush.bf16.msra.mxu0 %v422
    %440 = vmatpush.bf16.msra.mxu0 %v421
    %441 = vmatpush.bf16.msra.mxu0 %v420
    %442 = vmatpush.bf16.msra.mxu0 %v419
    %443 = vmatmul.bf16.gmra.mxu0 %v368
    %v444 = vpop.f32.mrf.mxu0
    %v445 = vadd.f32 0.0, %v444
    %v446 = vpop.f32.mrf.mxu0
    %v447 = vadd.f32 0.0, %v446
    %448 = vmatmul.bf16.gmra.mxu0 %v369
    %v449 = vpop.f32.mrf.mxu0
    %v450 = vadd.f32 0.0, %v449
    %v451 = vpop.f32.mrf.mxu0
    %v452 = vadd.f32 0.0, %v451
    %453 = vdwg.mxu0
    %v454 = vadd.f32 %v359, %v445
    %v455 = vadd.f32 %v361, %v447
    %v456 = vadd.f32 %v364, %v450
    %v457 = vadd.f32 %v366, %v452
    %v458 = vpack.c.bf16 %v190, %v188
    %v459 = vpack.c.bf16 %v195, %v193
    %s460 = scalar_lea.vmem [#allocation2], 192
    %v461 = vld [vmem:[%s460] sm:$0xf]
    %v462 = vld [vmem:[%s460 + $0x4] sm:$0xf]
    %v463 = vld [vmem:[%s460 + $0x8] sm:$0xf]
    %v464 = vld [vmem:[%s460 + $0xc] sm:$0xf]
    %v465 = vld [vmem:[%s460 + $0x10] sm:$0xf]
    %v466 = vld [vmem:[%s460 + $0x14] sm:$0xf]
    %v467 = vld [vmem:[%s460 + $0x18] sm:$0xf]
    %v468 = vld [vmem:[%s460 + $0x1c] sm:$0xf]
    %v469 = vld [vmem:[%s460 + $0x20] sm:$0xf]
    %v470 = vld [vmem:[%s460 + $0x24] sm:$0xf]
    %v471 = vld [vmem:[%s460 + $0x28] sm:$0xf]
    %v472 = vld [vmem:[%s460 + $0x2c] sm:$0xf]
    %v473 = vld [vmem:[%s460 + $0x30] sm:$0xf]
    %v474 = vld [vmem:[%s460 + $0x34] sm:$0xf]
    %v475 = vld [vmem:[%s460 + $0x38] sm:$0xf]
    %v476 = vld [vmem:[%s460 + $0x3c] sm:$0xf]
    %v493 = vunpack.c.l.b16 %v461
    %v494 = vunpack.c.l.b16 %v462
    %v495 = vunpack.c.l.b16 %v463
    %v496 = vunpack.c.l.b16 %v464
    %v497 = vunpack.c.l.b16 %v465
    %v498 = vunpack.c.l.b16 %v466
    %v499 = vunpack.c.l.b16 %v467
    %v500 = vunpack.c.l.b16 %v468
    %v501 = vunpack.c.l.b16 %v469
    %v502 = vunpack.c.l.b16 %v470
    %v503 = vunpack.c.l.b16 %v471
    %v504 = vunpack.c.l.b16 %v472
    %v505 = vunpack.c.l.b16 %v473
    %v506 = vunpack.c.l.b16 %v474
    %v507 = vunpack.c.l.b16 %v475
    %v508 = vunpack.c.l.b16 %v476
    %v509 = vpack.c.b16 %v494, %v493
    %v510 = vpack.c.b16 %v496, %v495
    %v511 = vpack.c.b16 %v498, %v497
    %v512 = vpack.c.b16 %v500, %v499
    %v513 = vpack.c.b16 %v502, %v501
    %v514 = vpack.c.b16 %v504, %v503
    %v515 = vpack.c.b16 %v506, %v505
    %v516 = vpack.c.b16 %v508, %v507
    %525 = vmatpush.bf16.msra.mxu0 %v516
    %526 = vmatpush.bf16.msra.mxu0 %v515
    %527 = vmatpush.bf16.msra.mxu0 %v514
    %528 = vmatpush.bf16.msra.mxu0 %v513
    %529 = vmatpush.bf16.msra.mxu0 %v512
    %530 = vmatpush.bf16.msra.mxu0 %v511
    %531 = vmatpush.bf16.msra.mxu0 %v510
    %532 = vmatpush.bf16.msra.mxu0 %v509
    %533 = vmatmul.bf16.gmra.mxu0 %v458
    %v534 = vpop.f32.mrf.mxu0
    %v535 = vadd.f32 0.0, %v534
    %v536 = vpop.f32.mrf.mxu0
    %v537 = vadd.f32 0.0, %v536
    %538 = vmatmul.bf16.gmra.mxu0 %v459
    %v539 = vpop.f32.mrf.mxu0
    %v540 = vadd.f32 0.0, %v539
    %v541 = vpop.f32.mrf.mxu0
    %v542 = vadd.f32 0.0, %v541
    %543 = vdwg.mxu0
    %v544 = vadd.f32 %v454, %v535
    %v545 = vadd.f32 %v455, %v537
    %v546 = vadd.f32 %v456, %v540
    %v547 = vadd.f32 %v457, %v542
    %v548 = vmax.f32 %v544, 0.0
    %v549 = vmax.f32 %v545, 0.0
    %v550 = vmax.f32 %v546, 0.0
    %v551 = vmax.f32 %v547, 0.0
    %v552 = vpack.c.bf16 %v549, %v548
    %v553 = vpack.c.bf16 %v551, %v550
    %s554 = scalar_lea.vmem %s1, 64
    %v555 = vld [vmem:[%s554] sm:$0xf]
    %v556 = vld [vmem:[%s554 + $0x4] sm:$0xf]
    %v557 = vld [vmem:[%s554 + $0x8] sm:$0xf]
    %v558 = vld [vmem:[%s554 + $0xc] sm:$0xf]
    %v559 = vld [vmem:[%s554 + $0x10] sm:$0xf]
    %v560 = vld [vmem:[%s554 + $0x14] sm:$0xf]
    %v561 = vld [vmem:[%s554 + $0x18] sm:$0xf]
    %v562 = vld [vmem:[%s554 + $0x1c] sm:$0xf]
    %v571 = vunpack.c.l.b16 %v555
    %v572 = vunpack.c.l.b16 %v556
    %v573 = vunpack.c.l.b16 %v557
    %v574 = vunpack.c.l.b16 %v558
    %v575 = vunpack.c.l.b16 %v559
    %v576 = vunpack.c.l.b16 %v560
    %v577 = vunpack.c.l.b16 %v561
    %v578 = vunpack.c.l.b16 %v562
    %v579 = vpack.c.b16 %v572, %v571
    %v580 = vpack.c.b16 %v574, %v573
    %v581 = vpack.c.b16 %v576, %v575
    %v582 = vpack.c.b16 %v578, %v577
    %vm583 = vcmask 261120
    %v585 = vsel %vm583, %v579, 0
    %v588 = vsel %vm583, %v580, 0
    %v591 = vsel %vm583, %v581, 0
    %v594 = vsel %vm583, %v582, 0
    %596 = vmatpush.bf16.msra.mxu0 0
    %597 = vmatpush.bf16.msra.mxu0 0
    %598 = vmatpush.bf16.msra.mxu0 0
    %599 = vmatpush.bf16.msra.mxu0 0
    %600 = vmatpush.bf16.msra.mxu0 0
    %601 = vmatpush.bf16.msra.mxu0 0
    %602 = vmatpush.bf16.msra.mxu0 %v553
    %603 = vmatpush.bf16.msra.mxu0 %v552
    %604 = vmatmul.bf16.gmra.mxu0 %v585
    %v605 = vpop.f32.mrf.mxu0
    %v606 = vadd.f32 0.0, %v605
    %v607 = vpop.f32.mrf.mxu0
    %v608 = vadd.f32 0.0, %v607
    %609 = vmatmul.bf16.gmra.mxu0 %v588
    %v610 = vpop.f32.mrf.mxu0
    %v611 = vadd.f32 0.0, %v610
    %v612 = vpop.f32.mrf.mxu0
    %v613 = vadd.f32 0.0, %v612
    %614 = vmatmul.bf16.gmra.mxu0 %v591
    %v615 = vpop.f32.mrf.mxu0
    %v616 = vadd.f32 0.0, %v615
    %v617 = vpop.f32.mrf.mxu0
    %v618 = vadd.f32 0.0, %v617
    %619 = vmatmul.bf16.gmra.mxu0 %v594
    %v620 = vpop.f32.mrf.mxu0
    %v621 = vadd.f32 0.0, %v620
    %v622 = vpop.f32.mrf.mxu0
    %v623 = vadd.f32 0.0, %v622
    %624 = vdwg.mxu0
    %v625 = vpack.c.bf16 %v608, %v606
    %s626 = scalar_lea.vmem [#allocation2], 256
    %v627 = vld [vmem:[%s626] sm:$0xf]
    %v628 = vld [vmem:[%s626 + $0x4] sm:$0xf]
    %v629 = vld [vmem:[%s626 + $0x8] sm:$0xf]
    %v630 = vld [vmem:[%s626 + $0xc] sm:$0xf]
    %v631 = vld [vmem:[%s626 + $0x10] sm:$0xf]
    %v632 = vld [vmem:[%s626 + $0x14] sm:$0xf]
    %v633 = vld [vmem:[%s626 + $0x18] sm:$0xf]
    %v634 = vld [vmem:[%s626 + $0x1c] sm:$0xf]
    %v635 = vld [vmem:[%s626 + $0x20] sm:$0xf]
    %v636 = vld [vmem:[%s626 + $0x24] sm:$0xf]
    %v637 = vld [vmem:[%s626 + $0x28] sm:$0xf]
    %v638 = vld [vmem:[%s626 + $0x2c] sm:$0xf]
    %v639 = vld [vmem:[%s626 + $0x30] sm:$0xf]
    %v640 = vld [vmem:[%s626 + $0x34] sm:$0xf]
    %v641 = vld [vmem:[%s626 + $0x38] sm:$0xf]
    %v642 = vld [vmem:[%s626 + $0x3c] sm:$0xf]
    %v643 = vpack.c.bf16 %v613, %v611
    %s644 = scalar_lea.vmem [#allocation2], 320
    %v645 = vld [vmem:[%s644] sm:$0xf]
    %v646 = vld [vmem:[%s644 + $0x4] sm:$0xf]
    %v647 = vld [vmem:[%s644 + $0x8] sm:$0xf]
    %v648 = vld [vmem:[%s644 + $0xc] sm:$0xf]
    %v649 = vld [vmem:[%s644 + $0x10] sm:$0xf]
    %v650 = vld [vmem:[%s644 + $0x14] sm:$0xf]
    %v651 = vld [vmem:[%s644 + $0x18] sm:$0xf]
    %v652 = vld [vmem:[%s644 + $0x1c] sm:$0xf]
    %v653 = vld [vmem:[%s644 + $0x20] sm:$0xf]
    %v654 = vld [vmem:[%s644 + $0x24] sm:$0xf]
    %v655 = vld [vmem:[%s644 + $0x28] sm:$0xf]
    %v656 = vld [vmem:[%s644 + $0x2c] sm:$0xf]
    %v657 = vld [vmem:[%s644 + $0x30] sm:$0xf]
    %v658 = vld [vmem:[%s644 + $0x34] sm:$0xf]
    %v659 = vld [vmem:[%s644 + $0x38] sm:$0xf]
    %v660 = vld [vmem:[%s644 + $0x3c] sm:$0xf]
    %v677 = vunpack.c.l.b16 %v645
    %v678 = vunpack.c.l.b16 %v646
    %v679 = vunpack.c.l.b16 %v647
    %v680 = vunpack.c.l.b16 %v648
    %v681 = vunpack.c.l.b16 %v649
    %v682 = vunpack.c.l.b16 %v650
    %v683 = vunpack.c.l.b16 %v651
    %v684 = vunpack.c.l.b16 %v652
    %v685 = vunpack.c.l.b16 %v653
    %v686 = vunpack.c.l.b16 %v654
    %v687 = vunpack.c.l.b16 %v655
    %v688 = vunpack.c.l.b16 %v656
    %v689 = vunpack.c.l.b16 %v657
    %v690 = vunpack.c.l.b16 %v658
    %v691 = vunpack.c.l.b16 %v659
    %v692 = vunpack.c.l.b16 %v660
    %v693 = vpack.c.b16 %v678, %v677
    %v694 = vpack.c.b16 %v680, %v679
    %v695 = vpack.c.b16 %v682, %v681
    %v696 = vpack.c.b16 %v684, %v683
    %v697 = vpack.c.b16 %v686, %v685
    %v698 = vpack.c.b16 %v688, %v687
    %v699 = vpack.c.b16 %v690, %v689
    %v700 = vpack.c.b16 %v692, %v691
    %709 = vmatpush.bf16.msra.mxu0 %v700
    %710 = vmatpush.bf16.msra.mxu0 %v699
    %711 = vmatpush.bf16.msra.mxu0 %v698
    %712 = vmatpush.bf16.msra.mxu0 %v697
    %713 = vmatpush.bf16.msra.mxu0 %v696
    %714 = vmatpush.bf16.msra.mxu0 %v695
    %715 = vmatpush.bf16.msra.mxu0 %v694
    %716 = vmatpush.bf16.msra.mxu0 %v693
    %717 = vmatmul.bf16.gmra.mxu0 %v643
    %v718 = vpop.f32.mrf.mxu0
    %v719 = vadd.f32 0.0, %v718
    %v720 = vpop.f32.mrf.mxu0
    %v721 = vadd.f32 0.0, %v720
    %722 = vdwg.mxu0
    %v739 = vunpack.c.l.b16 %v627
    %v740 = vunpack.c.l.b16 %v628
    %v741 = vunpack.c.l.b16 %v629
    %v742 = vunpack.c.l.b16 %v630
    %v743 = vunpack.c.l.b16 %v631
    %v744 = vunpack.c.l.b16 %v632
    %v745 = vunpack.c.l.b16 %v633
    %v746 = vunpack.c.l.b16 %v634
    %v747 = vunpack.c.l.b16 %v635
    %v748 = vunpack.c.l.b16 %v636
    %v749 = vunpack.c.l.b16 %v637
    %v750 = vunpack.c.l.b16 %v638
    %v751 = vunpack.c.l.b16 %v639
    %v752 = vunpack.c.l.b16 %v640
    %v753 = vunpack.c.l.b16 %v641
    %v754 = vunpack.c.l.b16 %v642
    %v755 = vpack.c.b16 %v740, %v739
    %v756 = vpack.c.b16 %v742, %v741
    %v757 = vpack.c.b16 %v744, %v743
    %v758 = vpack.c.b16 %v746, %v745
    %v759 = vpack.c.b16 %v748, %v747
    %v760 = vpack.c.b16 %v750, %v749
    %v761 = vpack.c.b16 %v752, %v751
    %v762 = vpack.c.b16 %v754, %v753
    %771 = vmatpush.bf16.msra.mxu0 %v762
    %772 = vmatpush.bf16.msra.mxu0 %v761
    %773 = vmatpush.bf16.msra.mxu0 %v760
    %774 = vmatpush.bf16.msra.mxu0 %v759
    %775 = vmatpush.bf16.msra.mxu0 %v758
    %776 = vmatpush.bf16.msra.mxu0 %v757
    %777 = vmatpush.bf16.msra.mxu0 %v756
    %778 = vmatpush.bf16.msra.mxu0 %v755
    %779 = vmatmul.bf16.gmra.mxu0 %v625
    %v780 = vpop.f32.mrf.mxu0
    %v781 = vadd.f32 %v719, %v780
    %v782 = vpop.f32.mrf.mxu0
    %v783 = vadd.f32 %v721, %v782
    %784 = vdwg.mxu0
    %v785 = vpack.c.bf16 %v618, %v616
    %s786 = scalar_lea.vmem [#allocation2], 384
    %v787 = vld [vmem:[%s786] sm:$0xf]
    %v788 = vld [vmem:[%s786 + $0x4] sm:$0xf]
    %v789 = vld [vmem:[%s786 + $0x8] sm:$0xf]
    %v790 = vld [vmem:[%s786 + $0xc] sm:$0xf]
    %v791 = vld [vmem:[%s786 + $0x10] sm:$0xf]
    %v792 = vld [vmem:[%s786 + $0x14] sm:$0xf]
    %v793 = vld [vmem:[%s786 + $0x18] sm:$0xf]
    %v794 = vld [vmem:[%s786 + $0x1c] sm:$0xf]
    %v795 = vld [vmem:[%s786 + $0x20] sm:$0xf]
    %v796 = vld [vmem:[%s786 + $0x24] sm:$0xf]
    %v797 = vld [vmem:[%s786 + $0x28] sm:$0xf]
    %v798 = vld [vmem:[%s786 + $0x2c] sm:$0xf]
    %v799 = vld [vmem:[%s786 + $0x30] sm:$0xf]
    %v800 = vld [vmem:[%s786 + $0x34] sm:$0xf]
    %v801 = vld [vmem:[%s786 + $0x38] sm:$0xf]
    %v802 = vld [vmem:[%s786 + $0x3c] sm:$0xf]
    %v819 = vunpack.c.l.b16 %v787
    %v820 = vunpack.c.l.b16 %v788
    %v821 = vunpack.c.l.b16 %v789
    %v822 = vunpack.c.l.b16 %v790
    %v823 = vunpack.c.l.b16 %v791
    %v824 = vunpack.c.l.b16 %v792
    %v825 = vunpack.c.l.b16 %v793
    %v826 = vunpack.c.l.b16 %v794
    %v827 = vunpack.c.l.b16 %v795
    %v828 = vunpack.c.l.b16 %v796
    %v829 = vunpack.c.l.b16 %v797
    %v830 = vunpack.c.l.b16 %v798
    %v831 = vunpack.c.l.b16 %v799
    %v832 = vunpack.c.l.b16 %v800
    %v833 = vunpack.c.l.b16 %v801
    %v834 = vunpack.c.l.b16 %v802
    %v835 = vpack.c.b16 %v820, %v819
    %v836 = vpack.c.b16 %v822, %v821
    %v837 = vpack.c.b16 %v824, %v823
    %v838 = vpack.c.b16 %v826, %v825
    %v839 = vpack.c.b16 %v828, %v827
    %v840 = vpack.c.b16 %v830, %v829
    %v841 = vpack.c.b16 %v832, %v831
    %v842 = vpack.c.b16 %v834, %v833
    %851 = vmatpush.bf16.msra.mxu0 %v842
    %852 = vmatpush.bf16.msra.mxu0 %v841
    %853 = vmatpush.bf16.msra.mxu0 %v840
    %854 = vmatpush.bf16.msra.mxu0 %v839
    %855 = vmatpush.bf16.msra.mxu0 %v838
    %856 = vmatpush.bf16.msra.mxu0 %v837
    %857 = vmatpush.bf16.msra.mxu0 %v836
    %858 = vmatpush.bf16.msra.mxu0 %v835
    %859 = vmatmul.bf16.gmra.mxu0 %v785
    %v860 = vpop.f32.mrf.mxu0
    %v861 = vadd.f32 0.0, %v860
    %v862 = vpop.f32.mrf.mxu0
    %v863 = vadd.f32 0.0, %v862
    %864 = vdwg.mxu0
    %v865 = vadd.f32 %v781, %v861
    %v866 = vadd.f32 %v783, %v863
    %v867 = vpack.c.bf16 %v623, %v621
    %s868 = scalar_lea.vmem [#allocation2], 448
    %v869 = vld [vmem:[%s868] sm:$0xf]
    %v870 = vld [vmem:[%s868 + $0x4] sm:$0xf]
    %v871 = vld [vmem:[%s868 + $0x8] sm:$0xf]
    %v872 = vld [vmem:[%s868 + $0xc] sm:$0xf]
    %v873 = vld [vmem:[%s868 + $0x10] sm:$0xf]
    %v874 = vld [vmem:[%s868 + $0x14] sm:$0xf]
    %v875 = vld [vmem:[%s868 + $0x18] sm:$0xf]
    %v876 = vld [vmem:[%s868 + $0x1c] sm:$0xf]
    %v877 = vld [vmem:[%s868 + $0x20] sm:$0xf]
    %v878 = vld [vmem:[%s868 + $0x24] sm:$0xf]
    %v879 = vld [vmem:[%s868 + $0x28] sm:$0xf]
    %v880 = vld [vmem:[%s868 + $0x2c] sm:$0xf]
    %v881 = vld [vmem:[%s868 + $0x30] sm:$0xf]
    %v882 = vld [vmem:[%s868 + $0x34] sm:$0xf]
    %v883 = vld [vmem:[%s868 + $0x38] sm:$0xf]
    %v884 = vld [vmem:[%s868 + $0x3c] sm:$0xf]
    %v901 = vunpack.c.l.b16 %v869
    %v902 = vunpack.c.l.b16 %v870
    %v903 = vunpack.c.l.b16 %v871
    %v904 = vunpack.c.l.b16 %v872
    %v905 = vunpack.c.l.b16 %v873
    %v906 = vunpack.c.l.b16 %v874
    %v907 = vunpack.c.l.b16 %v875
    %v908 = vunpack.c.l.b16 %v876
    %v909 = vunpack.c.l.b16 %v877
    %v910 = vunpack.c.l.b16 %v878
    %v911 = vunpack.c.l.b16 %v879
    %v912 = vunpack.c.l.b16 %v880
    %v913 = vunpack.c.l.b16 %v881
    %v914 = vunpack.c.l.b16 %v882
    %v915 = vunpack.c.l.b16 %v883
    %v916 = vunpack.c.l.b16 %v884
    %v917 = vpack.c.b16 %v902, %v901
    %v918 = vpack.c.b16 %v904, %v903
    %v919 = vpack.c.b16 %v906, %v905
    %v920 = vpack.c.b16 %v908, %v907
    %v921 = vpack.c.b16 %v910, %v909
    %v922 = vpack.c.b16 %v912, %v911
    %v923 = vpack.c.b16 %v914, %v913
    %v924 = vpack.c.b16 %v916, %v915
    %933 = vmatpush.bf16.msra.mxu0 %v924
    %934 = vmatpush.bf16.msra.mxu0 %v923
    %935 = vmatpush.bf16.msra.mxu0 %v922
    %936 = vmatpush.bf16.msra.mxu0 %v921
    %937 = vmatpush.bf16.msra.mxu0 %v920
    %938 = vmatpush.bf16.msra.mxu0 %v919
    %939 = vmatpush.bf16.msra.mxu0 %v918
    %940 = vmatpush.bf16.msra.mxu0 %v917
    %941 = vmatmul.bf16.gmra.mxu0 %v867
    %v942 = vpop.f32.mrf.mxu0
    %v943 = vadd.f32 0.0, %v942
    %v944 = vpop.f32.mrf.mxu0
    %v945 = vadd.f32 0.0, %v944
    %946 = vdwg.mxu0
    %v947 = vadd.f32 %v865, %v943
    %v948 = vadd.f32 %v866, %v945
    %v949 = vadd.f32 %v947, %v948
    %v950 = vrot.slane %v949, 4
    %v951 = vadd.f32 %v949, %v950
    %v952 = vrot.slane %v951, 2
    %v953 = vadd.f32 %v951, %v952
    %v954 = vrot.slane %v953, 1
    %v955 = vadd.f32 %v953, %v954
    %v956 = vmul.f32 %v947, %v947
    %v957 = vmul.f32 %v948, %v948
    %v958 = vadd.f32 %v956, %v957
    %v959 = vrot.slane %v958, 4
    %v960 = vadd.f32 %v958, %v959
    %v961 = vrot.slane %v960, 2
    %v962 = vadd.f32 %v960, %v961
    %v963 = vrot.slane %v962, 1
    %v964 = vadd.f32 %v962, %v963
    %965 = vrot.lane.b32.xlu0 %v955, 16
    %v966 = vpop.permute.xlu0 %965
    %v967 = vadd.f32 %v955, %v966
    %968 = vrot.lane.b32.xlu0 %v964, 16
    %v969 = vpop.permute.xlu0 %968
    %v970 = vadd.f32 %v964, %v969
    %971 = vrot.lane.b32.xlu0 %v967, 32
    %v972 = vpop.permute.xlu0 %971
    %v973 = vadd.f32 %v967, %v972
    %974 = vrot.lane.b32.xlu0 %v970, 32
    %v975 = vpop.permute.xlu0 %974
    %v976 = vadd.f32 %v970, %v975
    %977 = vrot.lane.b32.xlu0 %v973, 64
    %v978 = vpop.permute.xlu0 %977
    %v979 = vadd.f32 %v973, %v978
    %980 = vrot.lane.b32.xlu0 %v976, 64
    %v981 = vpop.permute.xlu0 %980
    %v982 = vadd.f32 %v976, %v981
    %v983 = vmul.f32 %v979, 0.0078125
    %v984 = vmul.f32 %v982, 0.0078125
    %v985 = vmul.f32 %v983, %v983
    %v986 = vsub.f32 %v984, %v985
    %v987 = vperm.slane %v983, 0
    %v988 = vsub.f32 %v947, %v987
    %v989 = vsub.f32 %v948, %v987
    %v990 = vadd.f32 %v986, 1e-05
    %v991 = vrsqrt.pop %v990
    %v992 = vmul.f32 %v991, %v990
    %v993 = vmul.f32 %v992, %v991
    %v994 = vmul.f32 0.5, %v993
    %v995 = vsub.f32 1.5, %v994
    %v996 = vmul.f32 %v991, %v995
    %vm997 = vweird.f32 %v990
    %vm998 = vweird.f32 %v991
    %vm999 = vmor %vm997, %vm998
    %v1000 = vsel %vm999, %v991, %v996
    %v1001 = vperm.slane %v1000, 0
    %v1002 = vmul.f32 %v988, %v1001
    %v1003 = vmul.f32 %v989, %v1001
    %v1004 = vperm.slane %v42, 0
    %v1005 = vmul.f32 %v1002, %v1004
    %v1006 = vmul.f32 %v1003, %v1004
    %v1007 = vperm.slane %v42, 1
    %v1008 = vadd.f32 %v1005, %v1007
    %v1009 = vadd.f32 %v1006, %v1007
    %v1010 = vmax.f32 %v1008, 0.0
    %v1011 = vmax.f32 %v1009, 0.0
    %v1012 = vpack.c.bf16 %v1011, %v1010
    %s1013 = scalar_lea.vmem %s1, 128
    %v1014 = vld [vmem:[%s1013] sm:$0xf]
    %v1015 = vld [vmem:[%s1013 + $0x4] sm:$0xf]
    %v1016 = vld [vmem:[%s1013 + $0x8] sm:$0xf]
    %v1017 = vld [vmem:[%s1013 + $0xc] sm:$0xf]
    %v1022 = vunpack.c.l.b16 %v1014
    %v1023 = vunpack.c.l.b16 %v1015
    %v1024 = vunpack.c.l.b16 %v1016
    %v1025 = vunpack.c.l.b16 %v1017
    %v1026 = vpack.c.b16 %v1023, %v1022
    %v1027 = vpack.c.b16 %v1025, %v1024
    %vm1028 = vcmask 130048
    %v1030 = vsel %vm1028, %v1026, 0
    %v1033 = vsel %vm1028, %v1027, 0
    %1035 = vmatpush.bf16.msra.mxu0 0
    %1036 = vmatpush.bf16.msra.mxu0 0
    %1037 = vmatpush.bf16.msra.mxu0 0
    %1038 = vmatpush.bf16.msra.mxu0 0
    %1039 = vmatpush.bf16.msra.mxu0 0
    %1040 = vmatpush.bf16.msra.mxu0 0
    %1041 = vmatpush.bf16.msra.mxu0 0
    %1042 = vmatpush.bf16.msra.mxu0 %v1012
    %1043 = vmatmul.bf16.gmra.mxu0 %v1030
    %v1044 = vpop.f32.mrf.mxu0
    %v1045 = vadd.f32 0.0, %v1044
    %v1046 = vpop.f32.mrf.mxu0
    %v1047 = vadd.f32 0.0, %v1046
    %1048 = vmatmul.bf16.gmra.mxu0 %v1033
    %v1049 = vpop.f32.mrf.mxu0
    %v1050 = vadd.f32 0.0, %v1049
    %v1051 = vpop.f32.mrf.mxu0
    %v1052 = vadd.f32 0.0, %v1051
    %1053 = vdwg.mxu0
    %v1054 = vpack.c.bf16 %v1045, %v1045
    %s1055 = scalar_lea.vmem [#allocation2], 512
    %v1056 = vld [vmem:[%s1055] sm:$0xf]
    %v1057 = vld [vmem:[%s1055 + $0x4] sm:$0xf]
    %v1058 = vld [vmem:[%s1055 + $0x8] sm:$0xf]
    %v1059 = vld [vmem:[%s1055 + $0xc] sm:$0xf]
    %v1060 = vld [vmem:[%s1055 + $0x10] sm:$0xf]
    %v1061 = vld [vmem:[%s1055 + $0x14] sm:$0xf]
    %v1062 = vld [vmem:[%s1055 + $0x18] sm:$0xf]
    %v1063 = vld [vmem:[%s1055 + $0x1c] sm:$0xf]
    %v1064 = vld [vmem:[%s1055 + $0x20] sm:$0xf]
    %v1065 = vld [vmem:[%s1055 + $0x24] sm:$0xf]
    %v1066 = vld [vmem:[%s1055 + $0x28] sm:$0xf]
    %v1067 = vld [vmem:[%s1055 + $0x2c] sm:$0xf]
    %v1068 = vld [vmem:[%s1055 + $0x30] sm:$0xf]
    %v1069 = vld [vmem:[%s1055 + $0x34] sm:$0xf]
    %v1070 = vld [vmem:[%s1055 + $0x38] sm:$0xf]
    %v1071 = vld [vmem:[%s1055 + $0x3c] sm:$0xf]
    %v1072 = vpack.c.bf16 %v1047, %v1047
    %s1073 = scalar_lea.vmem [#allocation2], 576
    %v1074 = vld [vmem:[%s1073] sm:$0xf]
    %v1075 = vld [vmem:[%s1073 + $0x4] sm:$0xf]
    %v1076 = vld [vmem:[%s1073 + $0x8] sm:$0xf]
    %v1077 = vld [vmem:[%s1073 + $0xc] sm:$0xf]
    %v1078 = vld [vmem:[%s1073 + $0x10] sm:$0xf]
    %v1079 = vld [vmem:[%s1073 + $0x14] sm:$0xf]
    %v1080 = vld [vmem:[%s1073 + $0x18] sm:$0xf]
    %v1081 = vld [vmem:[%s1073 + $0x1c] sm:$0xf]
    %v1082 = vld [vmem:[%s1073 + $0x20] sm:$0xf]
    %v1083 = vld [vmem:[%s1073 + $0x24] sm:$0xf]
    %v1084 = vld [vmem:[%s1073 + $0x28] sm:$0xf]
    %v1085 = vld [vmem:[%s1073 + $0x2c] sm:$0xf]
    %v1086 = vld [vmem:[%s1073 + $0x30] sm:$0xf]
    %v1087 = vld [vmem:[%s1073 + $0x34] sm:$0xf]
    %v1088 = vld [vmem:[%s1073 + $0x38] sm:$0xf]
    %v1089 = vld [vmem:[%s1073 + $0x3c] sm:$0xf]
    %v1106 = vunpack.c.l.b16 %v1074
    %v1107 = vunpack.c.l.b16 %v1075
    %v1108 = vunpack.c.l.b16 %v1076
    %v1109 = vunpack.c.l.b16 %v1077
    %v1110 = vunpack.c.l.b16 %v1078
    %v1111 = vunpack.c.l.b16 %v1079
    %v1112 = vunpack.c.l.b16 %v1080
    %v1113 = vunpack.c.l.b16 %v1081
    %v1114 = vunpack.c.l.b16 %v1082
    %v1115 = vunpack.c.l.b16 %v1083
    %v1116 = vunpack.c.l.b16 %v1084
    %v1117 = vunpack.c.l.b16 %v1085
    %v1118 = vunpack.c.l.b16 %v1086
    %v1119 = vunpack.c.l.b16 %v1087
    %v1120 = vunpack.c.l.b16 %v1088
    %v1121 = vunpack.c.l.b16 %v1089
    %v1122 = vpack.c.b16 %v1107, %v1106
    %v1123 = vpack.c.b16 %v1109, %v1108
    %v1124 = vpack.c.b16 %v1111, %v1110
    %v1125 = vpack.c.b16 %v1113, %v1112
    %v1126 = vpack.c.b16 %v1115, %v1114
    %v1127 = vpack.c.b16 %v1117, %v1116
    %v1128 = vpack.c.b16 %v1119, %v1118
    %v1129 = vpack.c.b16 %v1121, %v1120
    %1138 = vmatpush.bf16.msra.mxu0 %v1129
    %1139 = vmatpush.bf16.msra.mxu0 %v1128
    %1140 = vmatpush.bf16.msra.mxu0 %v1127
    %1141 = vmatpush.bf16.msra.mxu0 %v1126
    %1142 = vmatpush.bf16.msra.mxu0 %v1125
    %1143 = vmatpush.bf16.msra.mxu0 %v1124
    %1144 = vmatpush.bf16.msra.mxu0 %v1123
    %1145 = vmatpush.bf16.msra.mxu0 %v1122
    %1146 = vmatmul.bf16.gmra.mxu0 %v1072
    %v1147 = vpop.f32.mrf.mxu0
    %v1148 = vadd.f32 0.0, %v1147
    %v1149 = vpop.f32.mrf.mxu0
    %1150 = vdwg.mxu0
    %v1167 = vunpack.c.l.b16 %v1056
    %v1168 = vunpack.c.l.b16 %v1057
    %v1169 = vunpack.c.l.b16 %v1058
    %v1170 = vunpack.c.l.b16 %v1059
    %v1171 = vunpack.c.l.b16 %v1060
    %v1172 = vunpack.c.l.b16 %v1061
    %v1173 = vunpack.c.l.b16 %v1062
    %v1174 = vunpack.c.l.b16 %v1063
    %v1175 = vunpack.c.l.b16 %v1064
    %v1176 = vunpack.c.l.b16 %v1065
    %v1177 = vunpack.c.l.b16 %v1066
    %v1178 = vunpack.c.l.b16 %v1067
    %v1179 = vunpack.c.l.b16 %v1068
    %v1180 = vunpack.c.l.b16 %v1069
    %v1181 = vunpack.c.l.b16 %v1070
    %v1182 = vunpack.c.l.b16 %v1071
    %v1183 = vpack.c.b16 %v1168, %v1167
    %v1184 = vpack.c.b16 %v1170, %v1169
    %v1185 = vpack.c.b16 %v1172, %v1171
    %v1186 = vpack.c.b16 %v1174, %v1173
    %v1187 = vpack.c.b16 %v1176, %v1175
    %v1188 = vpack.c.b16 %v1178, %v1177
    %v1189 = vpack.c.b16 %v1180, %v1179
    %v1190 = vpack.c.b16 %v1182, %v1181
    %1199 = vmatpush.bf16.msra.mxu0 %v1190
    %1200 = vmatpush.bf16.msra.mxu0 %v1189
    %1201 = vmatpush.bf16.msra.mxu0 %v1188
    %1202 = vmatpush.bf16.msra.mxu0 %v1187
    %1203 = vmatpush.bf16.msra.mxu0 %v1186
    %1204 = vmatpush.bf16.msra.mxu0 %v1185
    %1205 = vmatpush.bf16.msra.mxu0 %v1184
    %1206 = vmatpush.bf16.msra.mxu0 %v1183
    %1207 = vmatmul.bf16.gmra.mxu0 %v1054
    %v1208 = vpop.f32.mrf.mxu0
    %v1209 = vadd.f32 %v1148, %v1208
    %v1210 = vpop.f32.mrf.mxu0
    %1211 = vdwg.mxu0
    %v1212 = vpack.c.bf16 %v1050, %v1050
    %s1213 = scalar_lea.vmem [#allocation2], 640
    %v1214 = vld [vmem:[%s1213] sm:$0xf]
    %v1215 = vld [vmem:[%s1213 + $0x4] sm:$0xf]
    %v1216 = vld [vmem:[%s1213 + $0x8] sm:$0xf]
    %v1217 = vld [vmem:[%s1213 + $0xc] sm:$0xf]
    %v1218 = vld [vmem:[%s1213 + $0x10] sm:$0xf]
    %v1219 = vld [vmem:[%s1213 + $0x14] sm:$0xf]
    %v1220 = vld [vmem:[%s1213 + $0x18] sm:$0xf]
    %v1221 = vld [vmem:[%s1213 + $0x1c] sm:$0xf]
    %v1222 = vld [vmem:[%s1213 + $0x20] sm:$0xf]
    %v1223 = vld [vmem:[%s1213 + $0x24] sm:$0xf]
    %v1224 = vld [vmem:[%s1213 + $0x28] sm:$0xf]
    %v1225 = vld [vmem:[%s1213 + $0x2c] sm:$0xf]
    %v1226 = vld [vmem:[%s1213 + $0x30] sm:$0xf]
    %v1227 = vld [vmem:[%s1213 + $0x34] sm:$0xf]
    %v1228 = vld [vmem:[%s1213 + $0x38] sm:$0xf]
    %v1229 = vld [vmem:[%s1213 + $0x3c] sm:$0xf]
    %v1246 = vunpack.c.l.b16 %v1214
    %v1247 = vunpack.c.l.b16 %v1215
    %v1248 = vunpack.c.l.b16 %v1216
    %v1249 = vunpack.c.l.b16 %v1217
    %v1250 = vunpack.c.l.b16 %v1218
    %v1251 = vunpack.c.l.b16 %v1219
    %v1252 = vunpack.c.l.b16 %v1220
    %v1253 = vunpack.c.l.b16 %v1221
    %v1254 = vunpack.c.l.b16 %v1222
    %v1255 = vunpack.c.l.b16 %v1223
    %v1256 = vunpack.c.l.b16 %v1224
    %v1257 = vunpack.c.l.b16 %v1225
    %v1258 = vunpack.c.l.b16 %v1226
    %v1259 = vunpack.c.l.b16 %v1227
    %v1260 = vunpack.c.l.b16 %v1228
    %v1261 = vunpack.c.l.b16 %v1229
    %v1262 = vpack.c.b16 %v1247, %v1246
    %v1263 = vpack.c.b16 %v1249, %v1248
    %v1264 = vpack.c.b16 %v1251, %v1250
    %v1265 = vpack.c.b16 %v1253, %v1252
    %v1266 = vpack.c.b16 %v1255, %v1254
    %v1267 = vpack.c.b16 %v1257, %v1256
    %v1268 = vpack.c.b16 %v1259, %v1258
    %v1269 = vpack.c.b16 %v1261, %v1260
    %1278 = vmatpush.bf16.msra.mxu0 %v1269
    %1279 = vmatpush.bf16.msra.mxu0 %v1268
    %1280 = vmatpush.bf16.msra.mxu0 %v1267
    %1281 = vmatpush.bf16.msra.mxu0 %v1266
    %1282 = vmatpush.bf16.msra.mxu0 %v1265
    %1283 = vmatpush.bf16.msra.mxu0 %v1264
    %1284 = vmatpush.bf16.msra.mxu0 %v1263
    %1285 = vmatpush.bf16.msra.mxu0 %v1262
    %1286 = vmatmul.bf16.gmra.mxu0 %v1212
    %v1287 = vpop.f32.mrf.mxu0
    %v1288 = vadd.f32 0.0, %v1287
    %v1289 = vpop.f32.mrf.mxu0
    %1290 = vdwg.mxu0
    %v1291 = vadd.f32 %v1209, %v1288
    %v1292 = vpack.c.bf16 %v1052, %v1052
    %s1293 = scalar_lea.vmem [#allocation2], 704
    %v1294 = vld [vmem:[%s1293] sm:$0xf]
    %v1295 = vld [vmem:[%s1293 + $0x4] sm:$0xf]
    %v1296 = vld [vmem:[%s1293 + $0x8] sm:$0xf]
    %v1297 = vld [vmem:[%s1293 + $0xc] sm:$0xf]
    %v1298 = vld [vmem:[%s1293 + $0x10] sm:$0xf]
    %v1299 = vld [vmem:[%s1293 + $0x14] sm:$0xf]
    %v1300 = vld [vmem:[%s1293 + $0x18] sm:$0xf]
    %v1301 = vld [vmem:[%s1293 + $0x1c] sm:$0xf]
    %v1302 = vld [vmem:[%s1293 + $0x20] sm:$0xf]
    %v1303 = vld [vmem:[%s1293 + $0x24] sm:$0xf]
    %v1304 = vld [vmem:[%s1293 + $0x28] sm:$0xf]
    %v1305 = vld [vmem:[%s1293 + $0x2c] sm:$0xf]
    %v1306 = vld [vmem:[%s1293 + $0x30] sm:$0xf]
    %v1307 = vld [vmem:[%s1293 + $0x34] sm:$0xf]
    %v1308 = vld [vmem:[%s1293 + $0x38] sm:$0xf]
    %v1309 = vld [vmem:[%s1293 + $0x3c] sm:$0xf]
    %v1326 = vunpack.c.l.b16 %v1294
    %v1327 = vunpack.c.l.b16 %v1295
    %v1328 = vunpack.c.l.b16 %v1296
    %v1329 = vunpack.c.l.b16 %v1297
    %v1330 = vunpack.c.l.b16 %v1298
    %v1331 = vunpack.c.l.b16 %v1299
    %v1332 = vunpack.c.l.b16 %v1300
    %v1333 = vunpack.c.l.b16 %v1301
    %v1334 = vunpack.c.l.b16 %v1302
    %v1335 = vunpack.c.l.b16 %v1303
    %v1336 = vunpack.c.l.b16 %v1304
    %v1337 = vunpack.c.l.b16 %v1305
    %v1338 = vunpack.c.l.b16 %v1306
    %v1339 = vunpack.c.l.b16 %v1307
    %v1340 = vunpack.c.l.b16 %v1308
    %v1341 = vunpack.c.l.b16 %v1309
    %v1342 = vpack.c.b16 %v1327, %v1326
    %v1343 = vpack.c.b16 %v1329, %v1328
    %v1344 = vpack.c.b16 %v1331, %v1330
    %v1345 = vpack.c.b16 %v1333, %v1332
    %v1346 = vpack.c.b16 %v1335, %v1334
    %v1347 = vpack.c.b16 %v1337, %v1336
    %v1348 = vpack.c.b16 %v1339, %v1338
    %v1349 = vpack.c.b16 %v1341, %v1340
    %1358 = vmatpush.bf16.msra.mxu0 %v1349
    %1359 = vmatpush.bf16.msra.mxu0 %v1348
    %1360 = vmatpush.bf16.msra.mxu0 %v1347
    %1361 = vmatpush.bf16.msra.mxu0 %v1346
    %1362 = vmatpush.bf16.msra.mxu0 %v1345
    %1363 = vmatpush.bf16.msra.mxu0 %v1344
    %1364 = vmatpush.bf16.msra.mxu0 %v1343
    %1365 = vmatpush.bf16.msra.mxu0 %v1342
    %1366 = vmatmul.bf16.gmra.mxu0 %v1292
    %v1367 = vpop.f32.mrf.mxu0
    %v1368 = vadd.f32 0.0, %v1367
    %v1369 = vpop.f32.mrf.mxu0
    %1370 = vdwg.mxu0
    %v1371 = vadd.f32 %v1291, %v1368
    %v1372 = vrot.slane %v1371, 4
    %v1373 = vadd.f32 %v1371, %v1372
    %v1374 = vrot.slane %v1373, 2
    %v1375 = vadd.f32 %v1373, %v1374
    %v1376 = vrot.slane %v1375, 1
    %v1377 = vadd.f32 %v1375, %v1376
    %v1378 = vmul.f32 %v1371, %v1371
    %v1379 = vrot.slane %v1378, 4
    %v1380 = vadd.f32 %v1378, %v1379
    %v1381 = vrot.slane %v1380, 2
    %v1382 = vadd.f32 %v1380, %v1381
    %v1383 = vrot.slane %v1382, 1
    %v1384 = vadd.f32 %v1382, %v1383
    %1385 = vrot.lane.b32.xlu0 %v1377, 32
    %v1386 = vpop.permute.xlu0 %1385
    %v1387 = vadd.f32 %v1377, %v1386
    %1388 = vrot.lane.b32.xlu0 %v1384, 32
    %v1389 = vpop.permute.xlu0 %1388
    %v1390 = vadd.f32 %v1384, %v1389
    %1391 = vrot.lane.b32.xlu0 %v1387, 64
    %v1392 = vpop.permute.xlu0 %1391
    %v1393 = vadd.f32 %v1387, %v1392
    %1394 = vrot.lane.b32.xlu0 %v1390, 64
    %v1395 = vpop.permute.xlu0 %1394
    %v1396 = vadd.f32 %v1390, %v1395
    %v1397 = vmul.f32 %v1393, 0.03125
    %v1398 = vmul.f32 %v1396, 0.03125
    %v1399 = vmul.f32 %v1397, %v1397
    %v1400 = vsub.f32 %v1398, %v1399
    %v1401 = vperm.slane %v1397, 0
    %v1402 = vsub.f32 %v1371, %v1401
    %v1403 = vadd.f32 %v1400, 1e-05
    %v1404 = vrsqrt.pop %v1403
    %v1405 = vmul.f32 %v1404, %v1403
    %v1406 = vmul.f32 %v1405, %v1404
    %v1407 = vmul.f32 0.5, %v1406
    %v1408 = vsub.f32 1.5, %v1407
    %v1409 = vmul.f32 %v1404, %v1408
    %vm1410 = vweird.f32 %v1403
    %vm1411 = vweird.f32 %v1404
    %vm1412 = vmor %vm1410, %vm1411
    %v1413 = vsel %vm1412, %v1404, %v1409
    %v1414 = vperm.slane %v1413, 0
    %v1415 = vmul.f32 %v1402, %v1414
    %v1416 = vperm.slane %v42, 2
    %v1417 = vmul.f32 %v1415, %v1416
    %v1418 = vperm.slane %v42, 3
    %v1419 = vadd.f32 %v1417, %v1418
    %v1420 = vmax.f32 %v1419, 0.0
    %v1421 = vpack.c.bf16 %v1420, %v1420
    %s1422 = scalar_lea.vmem %s1, 192
    %v1423 = vld [vmem:[%s1422] sm:$0xf]
    %v1424 = vld [vmem:[%s1422 + $0x4] sm:$0xf]
    %v1425 = vld [vmem:[%s1422 + $0x8] sm:$0xf]
    %v1426 = vld [vmem:[%s1422 + $0xc] sm:$0xf]
    %v1431 = vunpack.c.l.b16 %v1423
    %v1432 = vunpack.c.l.b16 %v1424
    %v1433 = vunpack.c.l.b16 %v1425
    %v1434 = vunpack.c.l.b16 %v1426
    %v1435 = vpack.c.b16 %v1432, %v1431
    %v1436 = vpack.c.b16 %v1434, %v1433
    %vm1437 = vcmask 64512
    %v1439 = vsel %vm1437, %v1435, 0
    %v1442 = vsel %vm1437, %v1436, 0
    %vm1444 = vcmask 1043456
    %v1446 = vsel %vm1444, %v1421, 0
    %1448 = vmatpush.bf16.msra.mxu0 0
    %1449 = vmatpush.bf16.msra.mxu0 0
    %1450 = vmatpush.bf16.msra.mxu0 0
    %1451 = vmatpush.bf16.msra.mxu0 0
    %1452 = vmatpush.bf16.msra.mxu0 0
    %1453 = vmatpush.bf16.msra.mxu0 0
    %1454 = vmatpush.bf16.msra.mxu0 0
    %1455 = vmatpush.bf16.msra.mxu0 %v1446
    %1456 = vmatmul.bf16.gmra.mxu0 %v1439
    %v1457 = vpop.f32.mrf.mxu0
    %v1458 = vadd.f32 0.0, %v1457
    %v1459 = vpop.f32.mrf.mxu0
    %v1460 = vadd.f32 0.0, %v1459
    %1461 = vmatmul.bf16.gmra.mxu0 %v1442
    %v1462 = vpop.f32.mrf.mxu0
    %v1463 = vadd.f32 0.0, %v1462
    %v1464 = vpop.f32.mrf.mxu0
    %v1465 = vadd.f32 0.0, %v1464
    %1466 = vdwg.mxu0
    %v1467 = vpack.c.bf16 %v1458, %v1458
    %s1468 = scalar_lea.vmem [#allocation2], 768
    %v1469 = vld [vmem:[%s1468] sm:$0xf]
    %v1470 = vld [vmem:[%s1468 + $0x4] sm:$0xf]
    %v1471 = vld [vmem:[%s1468 + $0x8] sm:$0xf]
    %v1472 = vld [vmem:[%s1468 + $0xc] sm:$0xf]
    %v1473 = vld [vmem:[%s1468 + $0x10] sm:$0xf]
    %v1474 = vld [vmem:[%s1468 + $0x14] sm:$0xf]
    %v1475 = vld [vmem:[%s1468 + $0x18] sm:$0xf]
    %v1476 = vld [vmem:[%s1468 + $0x1c] sm:$0xf]
    %v1477 = vld [vmem:[%s1468 + $0x20] sm:$0xf]
    %v1478 = vld [vmem:[%s1468 + $0x24] sm:$0xf]
    %v1479 = vld [vmem:[%s1468 + $0x28] sm:$0xf]
    %v1480 = vld [vmem:[%s1468 + $0x2c] sm:$0xf]
    %v1481 = vld [vmem:[%s1468 + $0x30] sm:$0xf]
    %v1482 = vld [vmem:[%s1468 + $0x34] sm:$0xf]
    %v1483 = vld [vmem:[%s1468 + $0x38] sm:$0xf]
    %v1484 = vld [vmem:[%s1468 + $0x3c] sm:$0xf]
    %v1485 = vpack.c.bf16 %v1460, %v1460
    %s1486 = scalar_lea.vmem [#allocation2], 832
    %v1487 = vld [vmem:[%s1486] sm:$0xf]
    %v1488 = vld [vmem:[%s1486 + $0x4] sm:$0xf]
    %v1489 = vld [vmem:[%s1486 + $0x8] sm:$0xf]
    %v1490 = vld [vmem:[%s1486 + $0xc] sm:$0xf]
    %v1491 = vld [vmem:[%s1486 + $0x10] sm:$0xf]
    %v1492 = vld [vmem:[%s1486 + $0x14] sm:$0xf]
    %v1493 = vld [vmem:[%s1486 + $0x18] sm:$0xf]
    %v1494 = vld [vmem:[%s1486 + $0x1c] sm:$0xf]
    %v1495 = vld [vmem:[%s1486 + $0x20] sm:$0xf]
    %v1496 = vld [vmem:[%s1486 + $0x24] sm:$0xf]
    %v1497 = vld [vmem:[%s1486 + $0x28] sm:$0xf]
    %v1498 = vld [vmem:[%s1486 + $0x2c] sm:$0xf]
    %v1499 = vld [vmem:[%s1486 + $0x30] sm:$0xf]
    %v1500 = vld [vmem:[%s1486 + $0x34] sm:$0xf]
    %v1501 = vld [vmem:[%s1486 + $0x38] sm:$0xf]
    %v1502 = vld [vmem:[%s1486 + $0x3c] sm:$0xf]
    %v1519 = vunpack.c.l.b16 %v1487
    %v1520 = vunpack.c.l.b16 %v1488
    %v1521 = vunpack.c.l.b16 %v1489
    %v1522 = vunpack.c.l.b16 %v1490
    %v1523 = vunpack.c.l.b16 %v1491
    %v1524 = vunpack.c.l.b16 %v1492
    %v1525 = vunpack.c.l.b16 %v1493
    %v1526 = vunpack.c.l.b16 %v1494
    %v1527 = vunpack.c.l.b16 %v1495
    %v1528 = vunpack.c.l.b16 %v1496
    %v1529 = vunpack.c.l.b16 %v1497
    %v1530 = vunpack.c.l.b16 %v1498
    %v1531 = vunpack.c.l.b16 %v1499
    %v1532 = vunpack.c.l.b16 %v1500
    %v1533 = vunpack.c.l.b16 %v1501
    %v1534 = vunpack.c.l.b16 %v1502
    %v1535 = vpack.c.b16 %v1520, %v1519
    %v1536 = vpack.c.b16 %v1522, %v1521
    %v1537 = vpack.c.b16 %v1524, %v1523
    %v1538 = vpack.c.b16 %v1526, %v1525
    %v1539 = vpack.c.b16 %v1528, %v1527
    %v1540 = vpack.c.b16 %v1530, %v1529
    %v1541 = vpack.c.b16 %v1532, %v1531
    %v1542 = vpack.c.b16 %v1534, %v1533
    %1551 = vmatpush.bf16.msra.mxu0 %v1542
    %1552 = vmatpush.bf16.msra.mxu0 %v1541
    %1553 = vmatpush.bf16.msra.mxu0 %v1540
    %1554 = vmatpush.bf16.msra.mxu0 %v1539
    %1555 = vmatpush.bf16.msra.mxu0 %v1538
    %1556 = vmatpush.bf16.msra.mxu0 %v1537
    %1557 = vmatpush.bf16.msra.mxu0 %v1536
    %1558 = vmatpush.bf16.msra.mxu0 %v1535
    %1559 = vmatmul.bf16.gmra.mxu0 %v1485
    %v1560 = vpop.f32.mrf.mxu0
    %v1561 = vadd.f32 0.0, %v1560
    %v1562 = vpop.f32.mrf.mxu0
    %1563 = vdwg.mxu0
    %v1580 = vunpack.c.l.b16 %v1469
    %v1581 = vunpack.c.l.b16 %v1470
    %v1582 = vunpack.c.l.b16 %v1471
    %v1583 = vunpack.c.l.b16 %v1472
    %v1584 = vunpack.c.l.b16 %v1473
    %v1585 = vunpack.c.l.b16 %v1474
    %v1586 = vunpack.c.l.b16 %v1475
    %v1587 = vunpack.c.l.b16 %v1476
    %v1588 = vunpack.c.l.b16 %v1477
    %v1589 = vunpack.c.l.b16 %v1478
    %v1590 = vunpack.c.l.b16 %v1479
    %v1591 = vunpack.c.l.b16 %v1480
    %v1592 = vunpack.c.l.b16 %v1481
    %v1593 = vunpack.c.l.b16 %v1482
    %v1594 = vunpack.c.l.b16 %v1483
    %v1595 = vunpack.c.l.b16 %v1484
    %v1596 = vpack.c.b16 %v1581, %v1580
    %v1597 = vpack.c.b16 %v1583, %v1582
    %v1598 = vpack.c.b16 %v1585, %v1584
    %v1599 = vpack.c.b16 %v1587, %v1586
    %v1600 = vpack.c.b16 %v1589, %v1588
    %v1601 = vpack.c.b16 %v1591, %v1590
    %v1602 = vpack.c.b16 %v1593, %v1592
    %v1603 = vpack.c.b16 %v1595, %v1594
    %1612 = vmatpush.bf16.msra.mxu0 %v1603
    %1613 = vmatpush.bf16.msra.mxu0 %v1602
    %1614 = vmatpush.bf16.msra.mxu0 %v1601
    %1615 = vmatpush.bf16.msra.mxu0 %v1600
    %1616 = vmatpush.bf16.msra.mxu0 %v1599
    %1617 = vmatpush.bf16.msra.mxu0 %v1598
    %1618 = vmatpush.bf16.msra.mxu0 %v1597
    %1619 = vmatpush.bf16.msra.mxu0 %v1596
    %1620 = vmatmul.bf16.gmra.mxu0 %v1467
    %v1621 = vpop.f32.mrf.mxu0
    %v1622 = vadd.f32 %v1561, %v1621
    %v1623 = vpop.f32.mrf.mxu0
    %1624 = vdwg.mxu0
    %v1625 = vpack.c.bf16 %v1463, %v1463
    %s1626 = scalar_lea.vmem [#allocation2], 896
    %v1627 = vld [vmem:[%s1626] sm:$0xf]
    %v1628 = vld [vmem:[%s1626 + $0x4] sm:$0xf]
    %v1629 = vld [vmem:[%s1626 + $0x8] sm:$0xf]
    %v1630 = vld [vmem:[%s1626 + $0xc] sm:$0xf]
    %v1631 = vld [vmem:[%s1626 + $0x10] sm:$0xf]
    %v1632 = vld [vmem:[%s1626 + $0x14] sm:$0xf]
    %v1633 = vld [vmem:[%s1626 + $0x18] sm:$0xf]
    %v1634 = vld [vmem:[%s1626 + $0x1c] sm:$0xf]
    %v1635 = vld [vmem:[%s1626 + $0x20] sm:$0xf]
    %v1636 = vld [vmem:[%s1626 + $0x24] sm:$0xf]
    %v1637 = vld [vmem:[%s1626 + $0x28] sm:$0xf]
    %v1638 = vld [vmem:[%s1626 + $0x2c] sm:$0xf]
    %v1639 = vld [vmem:[%s1626 + $0x30] sm:$0xf]
    %v1640 = vld [vmem:[%s1626 + $0x34] sm:$0xf]
    %v1641 = vld [vmem:[%s1626 + $0x38] sm:$0xf]
    %v1642 = vld [vmem:[%s1626 + $0x3c] sm:$0xf]
    %v1659 = vunpack.c.l.b16 %v1627
    %v1660 = vunpack.c.l.b16 %v1628
    %v1661 = vunpack.c.l.b16 %v1629
    %v1662 = vunpack.c.l.b16 %v1630
    %v1663 = vunpack.c.l.b16 %v1631
    %v1664 = vunpack.c.l.b16 %v1632
    %v1665 = vunpack.c.l.b16 %v1633
    %v1666 = vunpack.c.l.b16 %v1634
    %v1667 = vunpack.c.l.b16 %v1635
    %v1668 = vunpack.c.l.b16 %v1636
    %v1669 = vunpack.c.l.b16 %v1637
    %v1670 = vunpack.c.l.b16 %v1638
    %v1671 = vunpack.c.l.b16 %v1639
    %v1672 = vunpack.c.l.b16 %v1640
    %v1673 = vunpack.c.l.b16 %v1641
    %v1674 = vunpack.c.l.b16 %v1642
    %v1675 = vpack.c.b16 %v1660, %v1659
    %v1676 = vpack.c.b16 %v1662, %v1661
    %v1677 = vpack.c.b16 %v1664, %v1663
    %v1678 = vpack.c.b16 %v1666, %v1665
    %v1679 = vpack.c.b16 %v1668, %v1667
    %v1680 = vpack.c.b16 %v1670, %v1669
    %v1681 = vpack.c.b16 %v1672, %v1671
    %v1682 = vpack.c.b16 %v1674, %v1673
    %1691 = vmatpush.bf16.msra.mxu0 %v1682
    %1692 = vmatpush.bf16.msra.mxu0 %v1681
    %1693 = vmatpush.bf16.msra.mxu0 %v1680
    %1694 = vmatpush.bf16.msra.mxu0 %v1679
    %1695 = vmatpush.bf16.msra.mxu0 %v1678
    %1696 = vmatpush.bf16.msra.mxu0 %v1677
    %1697 = vmatpush.bf16.msra.mxu0 %v1676
    %1698 = vmatpush.bf16.msra.mxu0 %v1675
    %1699 = vmatmul.bf16.gmra.mxu0 %v1625
    %v1700 = vpop.f32.mrf.mxu0
    %v1701 = vadd.f32 0.0, %v1700
    %v1702 = vpop.f32.mrf.mxu0
    %1703 = vdwg.mxu0
    %v1704 = vadd.f32 %v1622, %v1701
    %v1705 = vpack.c.bf16 %v1465, %v1465
    %s1706 = scalar_lea.vmem [#allocation2], 960
    %v1707 = vld [vmem:[%s1706] sm:$0xf]
    %v1708 = vld [vmem:[%s1706 + $0x4] sm:$0xf]
    %v1709 = vld [vmem:[%s1706 + $0x8] sm:$0xf]
    %v1710 = vld [vmem:[%s1706 + $0xc] sm:$0xf]
    %v1711 = vld [vmem:[%s1706 + $0x10] sm:$0xf]
    %v1712 = vld [vmem:[%s1706 + $0x14] sm:$0xf]
    %v1713 = vld [vmem:[%s1706 + $0x18] sm:$0xf]
    %v1714 = vld [vmem:[%s1706 + $0x1c] sm:$0xf]
    %v1715 = vld [vmem:[%s1706 + $0x20] sm:$0xf]
    %v1716 = vld [vmem:[%s1706 + $0x24] sm:$0xf]
    %v1717 = vld [vmem:[%s1706 + $0x28] sm:$0xf]
    %v1718 = vld [vmem:[%s1706 + $0x2c] sm:$0xf]
    %v1719 = vld [vmem:[%s1706 + $0x30] sm:$0xf]
    %v1720 = vld [vmem:[%s1706 + $0x34] sm:$0xf]
    %v1721 = vld [vmem:[%s1706 + $0x38] sm:$0xf]
    %v1722 = vld [vmem:[%s1706 + $0x3c] sm:$0xf]
    %v1739 = vunpack.c.l.b16 %v1707
    %v1740 = vunpack.c.l.b16 %v1708
    %v1741 = vunpack.c.l.b16 %v1709
    %v1742 = vunpack.c.l.b16 %v1710
    %v1743 = vunpack.c.l.b16 %v1711
    %v1744 = vunpack.c.l.b16 %v1712
    %v1745 = vunpack.c.l.b16 %v1713
    %v1746 = vunpack.c.l.b16 %v1714
    %v1747 = vunpack.c.l.b16 %v1715
    %v1748 = vunpack.c.l.b16 %v1716
    %v1749 = vunpack.c.l.b16 %v1717
    %v1750 = vunpack.c.l.b16 %v1718
    %v1751 = vunpack.c.l.b16 %v1719
    %v1752 = vunpack.c.l.b16 %v1720
    %v1753 = vunpack.c.l.b16 %v1721
    %v1754 = vunpack.c.l.b16 %v1722
    %v1755 = vpack.c.b16 %v1740, %v1739
    %v1756 = vpack.c.b16 %v1742, %v1741
    %v1757 = vpack.c.b16 %v1744, %v1743
    %v1758 = vpack.c.b16 %v1746, %v1745
    %v1759 = vpack.c.b16 %v1748, %v1747
    %v1760 = vpack.c.b16 %v1750, %v1749
    %v1761 = vpack.c.b16 %v1752, %v1751
    %v1762 = vpack.c.b16 %v1754, %v1753
    %1771 = vmatpush.bf16.msra.mxu0 %v1762
    %1772 = vmatpush.bf16.msra.mxu0 %v1761
    %1773 = vmatpush.bf16.msra.mxu0 %v1760
    %1774 = vmatpush.bf16.msra.mxu0 %v1759
    %1775 = vmatpush.bf16.msra.mxu0 %v1758
    %1776 = vmatpush.bf16.msra.mxu0 %v1757
    %1777 = vmatpush.bf16.msra.mxu0 %v1756
    %1778 = vmatpush.bf16.msra.mxu0 %v1755
    %1779 = vmatmul.bf16.gmra.mxu0 %v1705
    %v1780 = vpop.f32.mrf.mxu0
    %v1781 = vadd.f32 0.0, %v1780
    %v1782 = vpop.f32.mrf.mxu0
    %1783 = vdwg.mxu0
    %v1784 = vadd.f32 %v1704, %v1781
    %v1785 = vrot.slane %v1784, 4
    %v1786 = vadd.f32 %v1784, %v1785
    %v1787 = vrot.slane %v1786, 2
    %v1788 = vadd.f32 %v1786, %v1787
    %v1789 = vrot.slane %v1788, 1
    %v1790 = vadd.f32 %v1788, %v1789
    %v1791 = vmul.f32 %v1784, %v1784
    %v1792 = vrot.slane %v1791, 4
    %v1793 = vadd.f32 %v1791, %v1792
    %v1794 = vrot.slane %v1793, 2
    %v1795 = vadd.f32 %v1793, %v1794
    %v1796 = vrot.slane %v1795, 1
    %v1797 = vadd.f32 %v1795, %v1796
    %1798 = vrot.lane.b32.xlu0 %v1790, 64
    %v1799 = vpop.permute.xlu0 %1798
    %v1800 = vadd.f32 %v1790, %v1799
    %1801 = vrot.lane.b32.xlu0 %v1797, 64
    %v1802 = vpop.permute.xlu0 %1801
    %v1803 = vadd.f32 %v1797, %v1802
    %v1804 = vmul.f32 %v1800, 0.125
    %v1805 = vmul.f32 %v1803, 0.125
    %v1806 = vmul.f32 %v1804, %v1804
    %v1807 = vsub.f32 %v1805, %v1806
    %v1808 = vperm.slane %v1804, 0
    %v1809 = vsub.f32 %v1784, %v1808
    %v1810 = vadd.f32 %v1807, 1e-05
    %v1811 = vrsqrt.pop %v1810
    %v1812 = vmul.f32 %v1811, %v1810
    %v1813 = vmul.f32 %v1812, %v1811
    %v1814 = vmul.f32 0.5, %v1813
    %v1815 = vsub.f32 1.5, %v1814
    %v1816 = vmul.f32 %v1811, %v1815
    %vm1817 = vweird.f32 %v1810
    %vm1818 = vweird.f32 %v1811
    %vm1819 = vmor %vm1817, %vm1818
    %v1820 = vsel %vm1819, %v1811, %v1816
    %v1821 = vperm.slane %v1820, 0
    %v1822 = vmul.f32 %v1809, %v1821
    %v1823 = vperm.slane %v42, 4
    %v1824 = vmul.f32 %v1822, %v1823
    %v1825 = vperm.slane %v42, 5
    %v1826 = vadd.f32 %v1824, %v1825
    %v1827 = vmax.f32 %v1826, 0.0
    %v1828 = vpack.c.bf16 %v1827, %v1827
    %s1829 = scalar_lea.vmem %s1, 256
    %v1830 = vld [vmem:[%s1829] sm:$0xf]
    %v1831 = vld [vmem:[%s1829 + $0x4] sm:$0xf]
    %v1832 = vld [vmem:[%s1829 + $0x8] sm:$0xf]
    %v1833 = vld [vmem:[%s1829 + $0xc] sm:$0xf]
    %v1838 = vunpack.c.l.b16 %v1830
    %v1839 = vunpack.c.l.b16 %v1831
    %v1840 = vunpack.c.l.b16 %v1832
    %v1841 = vunpack.c.l.b16 %v1833
    %v1842 = vpack.c.b16 %v1839, %v1838
    %v1843 = vpack.c.b16 %v1841, %v1840
    %v1845 = vsel %vm1437, %v1842, 0
    %v1848 = vsel %vm1437, %v1843, 0
    %v1851 = vsel %vm1444, %v1828, 0
    %1853 = vmatpush.bf16.msra.mxu0 0
    %1854 = vmatpush.bf16.msra.mxu0 0
    %1855 = vmatpush.bf16.msra.mxu0 0
    %1856 = vmatpush.bf16.msra.mxu0 0
    %1857 = vmatpush.bf16.msra.mxu0 0
    %1858 = vmatpush.bf16.msra.mxu0 0
    %1859 = vmatpush.bf16.msra.mxu0 0
    %1860 = vmatpush.bf16.msra.mxu0 %v1851
    %1861 = vmatmul.bf16.gmra.mxu0 %v1845
    %v1862 = vpop.f32.mrf.mxu0
    %v1863 = vpop.f32.mrf.mxu0
    %v1864 = vadd.f32 0.0, %v1863
    %1865 = vmatmul.bf16.gmra.mxu0 %v1848
    %v1866 = vpop.f32.mrf.mxu0
    %v1867 = vadd.f32 0.0, %v1866
    %v1868 = vpop.f32.mrf.mxu0
    %1869 = vdwg.mxu0
    %v1870 = vpack.c.bf16 %v1864, %v1864
    %s1871 = scalar_lea.vmem [#allocation2], 1088
    %v1872 = vld [vmem:[%s1871] sm:$0xf]
    %v1873 = vld [vmem:[%s1871 + $0x4] sm:$0xf]
    %v1874 = vld [vmem:[%s1871 + $0x8] sm:$0xf]
    %v1875 = vld [vmem:[%s1871 + $0xc] sm:$0xf]
    %v1876 = vld [vmem:[%s1871 + $0x10] sm:$0xf]
    %v1877 = vld [vmem:[%s1871 + $0x14] sm:$0xf]
    %v1878 = vld [vmem:[%s1871 + $0x18] sm:$0xf]
    %v1879 = vld [vmem:[%s1871 + $0x1c] sm:$0xf]
    %v1880 = vld [vmem:[%s1871 + $0x20] sm:$0xf]
    %v1881 = vld [vmem:[%s1871 + $0x24] sm:$0xf]
    %v1882 = vld [vmem:[%s1871 + $0x28] sm:$0xf]
    %v1883 = vld [vmem:[%s1871 + $0x2c] sm:$0xf]
    %v1884 = vld [vmem:[%s1871 + $0x30] sm:$0xf]
    %v1885 = vld [vmem:[%s1871 + $0x34] sm:$0xf]
    %v1886 = vld [vmem:[%s1871 + $0x38] sm:$0xf]
    %v1887 = vld [vmem:[%s1871 + $0x3c] sm:$0xf]
    %v1888 = vpack.c.bf16 %v1867, %v1867
    %s1889 = scalar_lea.vmem [#allocation2], 1152
    %v1890 = vld [vmem:[%s1889] sm:$0xf]
    %v1891 = vld [vmem:[%s1889 + $0x4] sm:$0xf]
    %v1892 = vld [vmem:[%s1889 + $0x8] sm:$0xf]
    %v1893 = vld [vmem:[%s1889 + $0xc] sm:$0xf]
    %v1894 = vld [vmem:[%s1889 + $0x10] sm:$0xf]
    %v1895 = vld [vmem:[%s1889 + $0x14] sm:$0xf]
    %v1896 = vld [vmem:[%s1889 + $0x18] sm:$0xf]
    %v1897 = vld [vmem:[%s1889 + $0x1c] sm:$0xf]
    %v1898 = vld [vmem:[%s1889 + $0x20] sm:$0xf]
    %v1899 = vld [vmem:[%s1889 + $0x24] sm:$0xf]
    %v1900 = vld [vmem:[%s1889 + $0x28] sm:$0xf]
    %v1901 = vld [vmem:[%s1889 + $0x2c] sm:$0xf]
    %v1902 = vld [vmem:[%s1889 + $0x30] sm:$0xf]
    %v1903 = vld [vmem:[%s1889 + $0x34] sm:$0xf]
    %v1904 = vld [vmem:[%s1889 + $0x38] sm:$0xf]
    %v1905 = vld [vmem:[%s1889 + $0x3c] sm:$0xf]
    %v1922 = vunpack.c.l.b16 %v1890
    %v1923 = vunpack.c.l.b16 %v1891
    %v1924 = vunpack.c.l.b16 %v1892
    %v1925 = vunpack.c.l.b16 %v1893
    %v1926 = vunpack.c.l.b16 %v1894
    %v1927 = vunpack.c.l.b16 %v1895
    %v1928 = vunpack.c.l.b16 %v1896
    %v1929 = vunpack.c.l.b16 %v1897
    %v1930 = vunpack.c.l.b16 %v1898
    %v1931 = vunpack.c.l.b16 %v1899
    %v1932 = vunpack.c.l.b16 %v1900
    %v1933 = vunpack.c.l.b16 %v1901
    %v1934 = vunpack.c.l.b16 %v1902
    %v1935 = vunpack.c.l.b16 %v1903
    %v1936 = vunpack.c.l.b16 %v1904
    %v1937 = vunpack.c.l.b16 %v1905
    %v1938 = vpack.c.b16 %v1923, %v1922
    %v1939 = vpack.c.b16 %v1925, %v1924
    %v1940 = vpack.c.b16 %v1927, %v1926
    %v1941 = vpack.c.b16 %v1929, %v1928
    %v1942 = vpack.c.b16 %v1931, %v1930
    %v1943 = vpack.c.b16 %v1933, %v1932
    %v1944 = vpack.c.b16 %v1935, %v1934
    %v1945 = vpack.c.b16 %v1937, %v1936
    %1954 = vmatpush.bf16.msra.mxu0 %v1945
    %1955 = vmatpush.bf16.msra.mxu0 %v1944
    %1956 = vmatpush.bf16.msra.mxu0 %v1943
    %1957 = vmatpush.bf16.msra.mxu0 %v1942
    %1958 = vmatpush.bf16.msra.mxu0 %v1941
    %1959 = vmatpush.bf16.msra.mxu0 %v1940
    %1960 = vmatpush.bf16.msra.mxu0 %v1939
    %1961 = vmatpush.bf16.msra.mxu0 %v1938
    %1962 = vmatmul.bf16.gmra.mxu0 %v1888
    %v1963 = vpop.f32.mrf.mxu0
    %v1964 = vadd.f32 0.0, %v1963
    %v1965 = vpop.f32.mrf.mxu0
    %1966 = vdwg.mxu0
    %v1983 = vunpack.c.l.b16 %v1872
    %v1984 = vunpack.c.l.b16 %v1873
    %v1985 = vunpack.c.l.b16 %v1874
    %v1986 = vunpack.c.l.b16 %v1875
    %v1987 = vunpack.c.l.b16 %v1876
    %v1988 = vunpack.c.l.b16 %v1877
    %v1989 = vunpack.c.l.b16 %v1878
    %v1990 = vunpack.c.l.b16 %v1879
    %v1991 = vunpack.c.l.b16 %v1880
    %v1992 = vunpack.c.l.b16 %v1881
    %v1993 = vunpack.c.l.b16 %v1882
    %v1994 = vunpack.c.l.b16 %v1883
    %v1995 = vunpack.c.l.b16 %v1884
    %v1996 = vunpack.c.l.b16 %v1885
    %v1997 = vunpack.c.l.b16 %v1886
    %v1998 = vunpack.c.l.b16 %v1887
    %v1999 = vpack.c.b16 %v1984, %v1983
    %v2000 = vpack.c.b16 %v1986, %v1985
    %v2001 = vpack.c.b16 %v1988, %v1987
    %v2002 = vpack.c.b16 %v1990, %v1989
    %v2003 = vpack.c.b16 %v1992, %v1991
    %v2004 = vpack.c.b16 %v1994, %v1993
    %v2005 = vpack.c.b16 %v1996, %v1995
    %v2006 = vpack.c.b16 %v1998, %v1997
    %2015 = vmatpush.bf16.msra.mxu0 %v2006
    %2016 = vmatpush.bf16.msra.mxu0 %v2005
    %2017 = vmatpush.bf16.msra.mxu0 %v2004
    %2018 = vmatpush.bf16.msra.mxu0 %v2003
    %2019 = vmatpush.bf16.msra.mxu0 %v2002
    %2020 = vmatpush.bf16.msra.mxu0 %v2001
    %2021 = vmatpush.bf16.msra.mxu0 %v2000
    %2022 = vmatpush.bf16.msra.mxu0 %v1999
    %2023 = vmatmul.bf16.gmra.mxu0 %v1870
    %v2024 = vpop.f32.mrf.mxu0
    %v2025 = vadd.f32 %v1964, %v2024
    %v2026 = vpop.f32.mrf.mxu0
    %2027 = vdwg.mxu0
    %2028 = vst [vmem:[%s4] sm:$0xff] %v2025
    // Predicated region
    $region22: #{forward.1} parent=1 // pred_check
      _
    $region23: #{forward.1} parent=1 // pred_check_branch
      %2030 = sbr.rel (0) target = $region25
    $region24: #{forward.1} parent=1 // pred_region
      _
    $region25: #{forward.1} parent=1 // pred_fallthru
      _
    // Predicated region
    $region26: #{forward.1} parent=1 // pred_check
      _
    $region27: #{forward.1} parent=1 // pred_check_branch
      %2032 = sbr.rel (0) target = $region29
    $region28: #{forward.1} parent=1 // pred_region
      _
    $region29: #{forward.1} parent=1 // pred_fallthru
      _
    %2033 = vsyncpa [#allocation3], 1

</llo_original>
